<compile_context>
chip_gen: v5e
topology: v5e:2x2
jax: 0.10.0
libtpu: 0.0.40
codegen_flags: <defaults>
</compile_context>

<pallas_src>
import numpy as np
import jax
import jax.numpy as jnp
from jax.experimental import pallas as pl
from jax.experimental.pallas import tpu as pltpu


# ------------------------------ parameters ---------------------------------

def init_params(key):
    """Random parameters in PyTorch layouts (Conv2d: (out,in,kh,kw);
    ConvTranspose2d: (in,out,kh,kw); Linear: (out,in))."""
    ks = jax.random.split(key, 12)

    def u(k, shape, fan_in):
        lim = 1.0 / float(np.sqrt(fan_in))
        return jax.random.uniform(k, shape, jnp.float32, -lim, lim)

    return {
        'enc_conv_w': u(ks[0], (4, 1, 3, 3), 9),      # Conv2d(1,4,3,1,0)
        'enc_conv_b': u(ks[1], (4,), 9),
        'enc_fc1_w':  u(ks[2], (25, 196), 196),       # Linear(196,25)
        'enc_fc1_b':  u(ks[3], (25,), 196),
        'enc_fc2_w':  u(ks[4], (25, 25), 25),         # Linear(25,25)
        'enc_fc2_b':  u(ks[5], (25,), 25),
        'dec_fc_w':   u(ks[6], (50, 25), 25),         # Linear(25,50)
        'dec_fc_b':   u(ks[7], (50,), 25),
        'dec_ct1_w':  u(ks[8], (2, 4, 3, 3), 36),     # ConvTranspose2d(2,4,3,1,0)
        'dec_ct1_b':  u(ks[9], (4,), 36),
        'dec_ct2_w':  u(ks[10], (4, 1, 3, 3), 9),     # ConvTranspose2d(4,1,3,1,0)
        'dec_ct2_b':  u(ks[11], (1,), 9),
    }


# ----------- fold spatial ops into dense operators (host numpy, once) ------

def fold_params(params):
    """Exact weight preprocessing: fold conv / pool-phase selection / transposed
    convs / nearest upsamples / flatten orderings into dense, (8,128)-padded
    matrices so the whole forward is a chain of 2-D matmuls in one Pallas kernel.
    Matmul operands are returned in bf16 (f32 accumulation in-kernel); biases f32."""
    cw = np.asarray(params['enc_conv_w'], np.float32)     # (4,1,3,3)
    cb = np.asarray(params['enc_conv_b'], np.float32)     # (4,)
    w1 = np.asarray(params['enc_fc1_w'], np.float32)      # (25,196)
    b1 = np.asarray(params['enc_fc1_b'], np.float32)
    w2 = np.asarray(params['enc_fc2_w'], np.float32)      # (25,25)
    b2 = np.asarray(params['enc_fc2_b'], np.float32)
    w3 = np.asarray(params['dec_fc_w'], np.float32)       # (50,25)
    b3 = np.asarray(params['dec_fc_b'], np.float32)
    tw1 = np.asarray(params['dec_ct1_w'], np.float32)     # (2,4,3,3)
    tb1 = np.asarray(params['dec_ct1_b'], np.float32)
    tw2 = np.asarray(params['dec_ct2_w'], np.float32)     # (4,1,3,3)
    tb2 = np.asarray(params['dec_ct2_b'], np.float32)

    # --- Conv2d(1,4,3)+Sigmoid+MaxPool2d(2,2)+Flatten -----------------------
    # wp[p] maps x_flat[h*16+w] -> conv pre-activation at pooled-window phase
    # p = a*2+b (output pixel (2i+a, 2j+b)); columns ordered c*49+i*7+j, which is
    # exactly PyTorch's (C,H,W) flatten of the pooled feature map.
    wp = np.zeros((4, 256, 196), np.float32)
    for a in range(2):
        for b in range(2):
            p = a * 2 + b
            for c in range(4):
                for i in range(7):
                    for j in range(7):
                        m = c * 49 + i * 7 + j
                        for ky in range(3):
                            for kx in range(3):
                                h = 2 * i + a + ky
                                w = 2 * j + b + kx
                                wp[p, h * 16 + w, m] += cw[c, 0, ky, kx]
    # concatenate the 4 phases, each lane-padded 196 -> 256  =>  (256, 1024)
    wpc = np.zeros((256, 4 * 256), np.float32)
    for p in range(4):
        wpc[:, p * 256:p * 256 + 196] = wp[p]
    bpc = np.zeros((1, 256), np.float32)
    bpc[0, :196] = np.repeat(cb, 49)

    # --- Linear layers, padded to 128-lane granularity -----------------------
    w1p = np.zeros((256, 128), np.float32); w1p[:196, :25] = w1.T
    b1p = np.zeros((1, 128), np.float32);   b1p[0, :25] = b1
    w2p = np.zeros((128, 128), np.float32); w2p[:25, :25] = w2.T
    b2p = np.zeros((1, 128), np.float32);   b2p[0, :25] = b2
    w3p = np.zeros((128, 128), np.float32); w3p[:25, :50] = w3.T
    b3p = np.zeros((1, 128), np.float32);   b3p[0, :50] = b3

    # --- view(-1,2,5,5)+Upsample(x2,nearest)+ConvTranspose2d(2,4,3,1,0) -----
    # maps h[d=ci*25+iy*5+ix] -> pre-activation, columns co*144 + oy*12 + ox.
    wd1 = np.zeros((50, 576), np.float32)
    for co in range(4):
        for oy in range(12):
            for ox in range(12):
                m = co * 144 + oy * 12 + ox
                for ci in range(2):
                    for ky in range(3):
                        for kx in range(3):
                            yy, xx = oy - ky, ox - kx
                            if 0 <= yy < 10 and 0 <= xx < 10:
                                d = ci * 25 + (yy // 2) * 5 + (xx // 2)
                                wd1[d, m] += tw1[ci, co, ky, kx]
    wd1p = np.zeros((128, 640), np.float32); wd1p[:50, :576] = wd1
    bd1p = np.zeros((1, 640), np.float32);   bd1p[0, :576] = np.repeat(tb1, 144)

    # --- ConvTranspose2d(4,1,3,1,0)+Sigmoid+Upsample(size=[16,16],nearest) ---
    # maps a[d=ci*144+y*12+x] -> final pre-activation, columns Y*16 + X.
    wd2 = np.zeros((576, 256), np.float32)
    for Y in range(16):
        oy = (Y * 14) // 16                                # PyTorch nearest: floor(dst*in/out)
        for X in range(16):
            ox = (X * 14) // 16
            col = Y * 16 + X
            for ci in range(4):
                for ky in range(3):
                    for kx in range(3):
                        yy, xx = oy - ky, ox - kx
                        if 0 <= yy < 12 and 0 <= xx < 12:
                            wd2[ci * 144 + yy * 12 + xx, col] += tw2[ci, 0, ky, kx]
    wd2p = np.zeros((640, 256), np.float32); wd2p[:576, :] = wd2
    bd2p = np.full((1, 256), float(tb2[0]), np.float32)

    def wj(a):  # matmul operands -> bf16 (f32 accumulation happens on the MXU)
        return jnp.asarray(a, jnp.bfloat16)

    def bj(a):  # biases stay f32 (elementwise math stays f32 on all chips)
        return jnp.asarray(a, jnp.float32)

    return {
        'wpc': wj(wpc), 'bp': bj(bpc),
        'w1': wj(w1p), 'b1': bj(b1p),
        'w2': wj(w2p), 'b2': bj(b2p),
        'w3': wj(w3p), 'b3': bj(b3p),
        'wd1': wj(wd1p), 'bd1': bj(bd1p),
        'wd2': wj(wd2p), 'bd2': bj(bd2p),
    }


# ------------------------------ Pallas kernel -------------------------------

def _sigmoid(v):
    # Single EUP push per element (tanh); the 0.5 mul/adds ride the VALU slots.
    return 0.5 * jnp.tanh(0.5 * v) + 0.5


def _fused_autoencoder_kernel(x_ref, wpc, bp, w1, b1, w2, b2, w3, b3,
                              wd1, bd1, wd2, bd2, o_ref):
    """Entire forward pass for one batch tile; all activations stay in VMEM/vregs."""
    x = x_ref[...]                                           # (bt, 256) f32

    def bdot(a, w_ref):
        # bf16 x bf16 -> f32 accumulate on the MXU (native rate).
        return jnp.dot(a.astype(jnp.bfloat16), w_ref[...],
                       preferred_element_type=jnp.float32)

    # encoder: Conv2d(1,4,3)+Sigmoid+MaxPool2d(2,2)+Flatten
    # = max over the 4 pooling phases of the conv pre-activation, + bias, sigmoid.
    # One matmul against the concatenated phase matrix; slices are 256-lane aligned.
    zall = bdot(x, wpc)                                      # (bt, 1024)
    z = jnp.maximum(jnp.maximum(zall[:, 0:256],   zall[:, 256:512]),
                    jnp.maximum(zall[:, 512:768], zall[:, 768:1024]))
    f = _sigmoid(z + bp[...])                                # (bt,256): (C,H,W) flat + pad

    h   = _sigmoid(bdot(f,   w1) + b1[...])                  # Linear(196,25)+Sigmoid (padded)
    lat = _sigmoid(bdot(h,   w2) + b2[...])                  # Linear(25,25)+Sigmoid (latent)

    # decoder
    g   = _sigmoid(bdot(lat, w3) + b3[...])                  # Linear(25,50)+Sigmoid
    d1  = _sigmoid(bdot(g,  wd1) + bd1[...])                 # view+Upsample(x2)+ConvT(2,4)+Sigmoid
    out = _sigmoid(bdot(d1, wd2) + bd2[...])                 # ConvT(4,1)+Sigmoid+Upsample(16,16)
    o_ref[...] = out.astype(o_ref.dtype)                     # (bt,256) lane-dense store


_OP_ORDER = ('wpc', 'bp', 'w1', 'b1', 'w2', 'b2', 'w3', 'b3',
             'wd1', 'bd1', 'wd2', 'bd2')


def _round_up(x, m):
    return ((x + m - 1) // m) * m


def autoencoder_forward(ops, x_nchw):
    """Fused forward. x_nchw: (N,1,16,16) float -> (N,1,16,16) float32."""
    N = x_nchw.shape[0]
    x2 = x_nchw.astype(jnp.float32).reshape(N, 256)          # flat h*16+w, lane-dense

    # Batch tile: large (amortizes the ~0.35us/step pipeline overhead, fills MXU
    # sublanes) but capped at 512 and sized so the grid has >=2 steps when the
    # batch allows it (v7x megacore split). N is zero-padded to a tile multiple.
    n8 = _round_up(max(N, 1), 8)
    bt = max(8, min(512, _round_up(-(-n8 // 2), 8)))
    n_pad = _round_up(n8, bt)
    if n_pad != N:
        x2 = jnp.concatenate([x2, jnp.zeros((n_pad - N, 256), x2.dtype)], axis=0)

    ws = [ops[k] for k in _OP_ORDER]

    flops = 2 * n_pad * (256 * 1024 + 256 * 128 + 128 * 128 +
                         128 * 128 + 128 * 640 + 640 * 256)
    trans = n_pad * (256 + 128 + 128 + 128 + 640 + 256)
    nbytes = sum(int(np.prod(w.shape)) * w.dtype.itemsize for w in ws) + 4 * 2 * n_pad * 256

    out = pl.pallas_call(
        _fused_autoencoder_kernel,
        out_shape=jax.ShapeDtypeStruct((n_pad, 256), jnp.float32),
        grid=(n_pad // bt,),
        in_specs=[pl.BlockSpec((bt, 256), lambda i: (i, 0))]
                 + [pl.BlockSpec(w.shape, lambda i: (0, 0)) for w in ws],
        out_specs=pl.BlockSpec((bt, 256), lambda i: (i, 0)),
        compiler_params=pltpu.CompilerParams(
            dimension_semantics=("parallel",),
            vmem_limit_bytes=64 * 1024 * 1024),
        cost_estimate=pl.CostEstimate(flops=flops, transcendentals=trans,
                                      bytes_accessed=nbytes),
    )(x2, *ws)
    return out[:N].reshape(N, 1, 16, 16)


# ---------------- direct XLA reference (correctness check only) -------------

def reference_forward(params, x_nchw):
    """Straightforward XLA mirror of the PyTorch layer sequence (full f32)."""
    hp = jax.lax.Precision.HIGHEST
    N = x_nchw.shape[0]
    x = x_nchw[:, 0].astype(jnp.float32)                        # (N,16,16)

    cw, cb = params['enc_conv_w'][:, 0], params['enc_conv_b']   # (4,3,3),(4,)
    y = jnp.zeros((N, 4, 14, 14), jnp.float32)
    for ky in range(3):
        for kx in range(3):
            y = y + x[:, None, ky:ky + 14, kx:kx + 14] * cw[None, :, ky, kx, None, None]
    y = jax.nn.sigmoid(y + cb[None, :, None, None])
    p = jnp.maximum(jnp.maximum(y[:, :, 0::2, 0::2], y[:, :, 0::2, 1::2]),
                    jnp.maximum(y[:, :, 1::2, 0::2], y[:, :, 1::2, 1::2]))
    f = p.reshape(N, 196)                                       # PyTorch (C,H,W) flatten
    h = jax.nn.sigmoid(jnp.dot(f, params['enc_fc1_w'].T, precision=hp) + params['enc_fc1_b'])
    z = jax.nn.sigmoid(jnp.dot(h, params['enc_fc2_w'].T, precision=hp) + params['enc_fc2_b'])
    g = jax.nn.sigmoid(jnp.dot(z, params['dec_fc_w'].T, precision=hp) + params['dec_fc_b'])

    u = jnp.repeat(jnp.repeat(g.reshape(N, 2, 5, 5), 2, axis=2), 2, axis=3)   # (N,2,10,10)
    tw1, tb1 = params['dec_ct1_w'], params['dec_ct1_b']
    up = jnp.pad(u, ((0, 0), (0, 0), (2, 2), (2, 2)))
    c1 = jnp.zeros((N, 4, 12, 12), jnp.float32)
    for ky in range(3):
        for kx in range(3):
            c1 = c1 + jnp.einsum('nchw,cd->ndhw',
                                 up[:, :, 2 - ky:14 - ky, 2 - kx:14 - kx],
                                 tw1[:, :, ky, kx], precision=hp)
    c1 = jax.nn.sigmoid(c1 + tb1[None, :, None, None])
    tw2, tb2 = params['dec_ct2_w'][:, 0], params['dec_ct2_b']
    p2 = jnp.pad(c1, ((0, 0), (0, 0), (2, 2), (2, 2)))
    c2 = jnp.zeros((N, 14, 14), jnp.float32)
    for ky in range(3):
        for kx in range(3):
            c2 = c2 + jnp.einsum('nchw,c->nhw',
                                 p2[:, :, 2 - ky:16 - ky, 2 - kx:16 - kx],
                                 tw2[:, ky, kx], precision=hp)
    c2 = jax.nn.sigmoid(c2 + tb2[0])
    idx = (jnp.arange(16) * 14) // 16                            # nearest resize 14 -> 16
    return c2[:, idx][:, :, idx][:, None, :, :]                  # (N,1,16,16)


# --------------------------------- main -------------------------------------

if __name__ == "__main__":
    key = jax.random.PRNGKey(0)
    pkey, xkey = jax.random.split(key)
    params = init_params(pkey)
    ops = fold_params(params)                                   # one-time weight prep

    x = jax.random.uniform(xkey, (2, 1, 16, 16), dtype=jnp.float32)   # greyscale NCHW

    fwd = jax.jit(autoencoder_forward)
    y = fwd(ops, x)
    jax.block_until_ready(y)

    assert y.shape == (2, 1, 16, 16), y.shape
    assert bool(jnp.all(jnp.isfinite(y)))

    # numerical check against a direct (non-Pallas, full-f32) XLA implementation;
    # kernel uses bf16 matmul inputs with f32 accumulation, hence the tolerance.
    y_ref = reference_forward(params, x)
    err = float(jnp.max(jnp.abs(y - y_ref)))
    assert err < 3e-2, f"kernel/reference mismatch: max abs err = {err}"

    print("KERNEL_OK")
</pallas_src>

<mosaic_0001>
module attributes {stable_mosaic.version = 11 : i64} {
  func.func @_fused_autoencoder_kernel(%arg0: i32, %arg1: memref<8x256xf32, #tpu.memory_space<vmem>>, %arg2: memref<256x1024xbf16, #tpu.memory_space<vmem>>, %arg3: memref<1x256xf32, #tpu.memory_space<vmem>>, %arg4: memref<256x128xbf16, #tpu.memory_space<vmem>>, %arg5: memref<1x128xf32, #tpu.memory_space<vmem>>, %arg6: memref<128x128xbf16, #tpu.memory_space<vmem>>, %arg7: memref<1x128xf32, #tpu.memory_space<vmem>>, %arg8: memref<128x128xbf16, #tpu.memory_space<vmem>>, %arg9: memref<1x128xf32, #tpu.memory_space<vmem>>, %arg10: memref<128x640xbf16, #tpu.memory_space<vmem>>, %arg11: memref<1x640xf32, #tpu.memory_space<vmem>>, %arg12: memref<640x256xbf16, #tpu.memory_space<vmem>>, %arg13: memref<1x256xf32, #tpu.memory_space<vmem>>, %arg14: memref<8x256xf32, #tpu.memory_space<vmem>>) attributes {dimension_semantics = [#tpu.dimension_semantics<parallel>], iteration_bounds = array<i64: 1>, scalar_prefetch = 0 : i64, scratch_operands = 0 : i64, tpu.core_type = #tpu.core_type<tc>, window_params = [{transform_indices = @transform_0, window_bounds = array<i64: 8, 256>}, {pipeline_mode = #tpu.pipeline_mode<synchronous>, transform_indices = @transform_1, window_bounds = array<i64: 256, 1024>}, {pipeline_mode = #tpu.pipeline_mode<synchronous>, transform_indices = @transform_2, window_bounds = array<i64: 1, 256>}, {pipeline_mode = #tpu.pipeline_mode<synchronous>, transform_indices = @transform_3, window_bounds = array<i64: 256, 128>}, {pipeline_mode = #tpu.pipeline_mode<synchronous>, transform_indices = @transform_4, window_bounds = array<i64: 1, 128>}, {pipeline_mode = #tpu.pipeline_mode<synchronous>, transform_indices = @transform_5, window_bounds = array<i64: 128, 128>}, {pipeline_mode = #tpu.pipeline_mode<synchronous>, transform_indices = @transform_6, window_bounds = array<i64: 1, 128>}, {pipeline_mode = #tpu.pipeline_mode<synchronous>, transform_indices = @transform_7, window_bounds = array<i64: 128, 128>}, {pipeline_mode = #tpu.pipeline_mode<synchronous>, transform_indices = @transform_8, window_bounds = array<i64: 1, 128>}, {pipeline_mode = #tpu.pipeline_mode<synchronous>, transform_indices = @transform_9, window_bounds = array<i64: 128, 640>}, {pipeline_mode = #tpu.pipeline_mode<synchronous>, transform_indices = @transform_10, window_bounds = array<i64: 1, 640>}, {pipeline_mode = #tpu.pipeline_mode<synchronous>, transform_indices = @transform_11, window_bounds = array<i64: 640, 256>}, {pipeline_mode = #tpu.pipeline_mode<synchronous>, transform_indices = @transform_12, window_bounds = array<i64: 1, 256>}, {transform_indices = @transform_13, window_bounds = array<i64: 8, 256>}]} {
    %c0 = arith.constant 0 : index
    %c0_0 = arith.constant 0 : index
    %0 = vector.load %arg1[%c0, %c0_0] : memref<8x256xf32, #tpu.memory_space<vmem>>, vector<8x256xf32>
    %1 = arith.truncf %0 : vector<8x256xf32> to vector<8x256xbf16>
    %c0_1 = arith.constant 0 : index
    %c0_2 = arith.constant 0 : index
    %2 = vector.load %arg2[%c0_1, %c0_2] : memref<256x1024xbf16, #tpu.memory_space<vmem>>, vector<256x1024xbf16>
    %cst = arith.constant dense<0.000000e+00> : vector<8x1024xf32>
    %3 = tpu.matmul %1, %2, %cst {dimension_numbers = #tpu.dot_dimension_numbers<[1], [0], [0], [1], [0, 0, 1, 1], [], []>} : vector<8x256xbf16>, vector<256x1024xbf16>, vector<8x1024xf32> -> vector<8x1024xf32>
    %4 = vector.extract_strided_slice %3 {offsets = [0, 0], sizes = [8, 256], strides = [1, 1]} : vector<8x1024xf32> to vector<8x256xf32>
    %5 = vector.extract_strided_slice %3 {offsets = [0, 256], sizes = [8, 256], strides = [1, 1]} : vector<8x1024xf32> to vector<8x256xf32>
    %6 = arith.maximumf %4, %5 : vector<8x256xf32>
    %7 = vector.extract_strided_slice %3 {offsets = [0, 512], sizes = [8, 256], strides = [1, 1]} : vector<8x1024xf32> to vector<8x256xf32>
    %8 = vector.extract_strided_slice %3 {offsets = [0, 768], sizes = [8, 256], strides = [1, 1]} : vector<8x1024xf32> to vector<8x256xf32>
    %9 = arith.maximumf %7, %8 : vector<8x256xf32>
    %10 = arith.maximumf %6, %9 : vector<8x256xf32>
    %c0_3 = arith.constant 0 : index
    %c0_4 = arith.constant 0 : index
    %11 = vector.load %arg3[%c0_3, %c0_4] : memref<1x256xf32, #tpu.memory_space<vmem>>, vector<1x256xf32>
    %12 = vector.broadcast %11 : vector<1x256xf32> to vector<8x256xf32>
    %13 = arith.addf %10, %12 : vector<8x256xf32>
    %cst_5 = arith.constant 5.000000e-01 : f32
    %14 = vector.broadcast %cst_5 : f32 to vector<8x256xf32>
    %15 = arith.mulf %14, %13 : vector<8x256xf32>
    %16 = math.tanh %15 : vector<8x256xf32>
    %cst_6 = arith.constant 5.000000e-01 : f32
    %17 = vector.broadcast %cst_6 : f32 to vector<8x256xf32>
    %18 = arith.mulf %17, %16 : vector<8x256xf32>
    %cst_7 = arith.constant 5.000000e-01 : f32
    %19 = vector.broadcast %cst_7 : f32 to vector<8x256xf32>
    %20 = arith.addf %18, %19 : vector<8x256xf32>
    %21 = arith.truncf %20 : vector<8x256xf32> to vector<8x256xbf16>
    %c0_8 = arith.constant 0 : index
    %c0_9 = arith.constant 0 : index
    %22 = vector.load %arg4[%c0_8, %c0_9] : memref<256x128xbf16, #tpu.memory_space<vmem>>, vector<256x128xbf16>
    %cst_10 = arith.constant dense<0.000000e+00> : vector<8x128xf32>
    %23 = tpu.matmul %21, %22, %cst_10 {dimension_numbers = #tpu.dot_dimension_numbers<[1], [0], [0], [1], [0, 0, 1, 1], [], []>} : vector<8x256xbf16>, vector<256x128xbf16>, vector<8x128xf32> -> vector<8x128xf32>
    %c0_11 = arith.constant 0 : index
    %c0_12 = arith.constant 0 : index
    %24 = vector.load %arg5[%c0_11, %c0_12] : memref<1x128xf32, #tpu.memory_space<vmem>>, vector<1x128xf32>
    %25 = vector.broadcast %24 : vector<1x128xf32> to vector<8x128xf32>
    %26 = arith.addf %23, %25 : vector<8x128xf32>
    %cst_13 = arith.constant 5.000000e-01 : f32
    %27 = vector.broadcast %cst_13 : f32 to vector<8x128xf32>
    %28 = arith.mulf %27, %26 : vector<8x128xf32>
    %29 = math.tanh %28 : vector<8x128xf32>
    %cst_14 = arith.constant 5.000000e-01 : f32
    %30 = vector.broadcast %cst_14 : f32 to vector<8x128xf32>
    %31 = arith.mulf %30, %29 : vector<8x128xf32>
    %cst_15 = arith.constant 5.000000e-01 : f32
    %32 = vector.broadcast %cst_15 : f32 to vector<8x128xf32>
    %33 = arith.addf %31, %32 : vector<8x128xf32>
    %34 = arith.truncf %33 : vector<8x128xf32> to vector<8x128xbf16>
    %c0_16 = arith.constant 0 : index
    %c0_17 = arith.constant 0 : index
    %35 = vector.load %arg6[%c0_16, %c0_17] : memref<128x128xbf16, #tpu.memory_space<vmem>>, vector<128x128xbf16>
    %cst_18 = arith.constant dense<0.000000e+00> : vector<8x128xf32>
    %36 = tpu.matmul %34, %35, %cst_18 {dimension_numbers = #tpu.dot_dimension_numbers<[1], [0], [0], [1], [0, 0, 1, 1], [], []>} : vector<8x128xbf16>, vector<128x128xbf16>, vector<8x128xf32> -> vector<8x128xf32>
    %c0_19 = arith.constant 0 : index
    %c0_20 = arith.constant 0 : index
    %37 = vector.load %arg7[%c0_19, %c0_20] : memref<1x128xf32, #tpu.memory_space<vmem>>, vector<1x128xf32>
    %38 = vector.broadcast %37 : vector<1x128xf32> to vector<8x128xf32>
    %39 = arith.addf %36, %38 : vector<8x128xf32>
    %cst_21 = arith.constant 5.000000e-01 : f32
    %40 = vector.broadcast %cst_21 : f32 to vector<8x128xf32>
    %41 = arith.mulf %40, %39 : vector<8x128xf32>
    %42 = math.tanh %41 : vector<8x128xf32>
    %cst_22 = arith.constant 5.000000e-01 : f32
    %43 = vector.broadcast %cst_22 : f32 to vector<8x128xf32>
    %44 = arith.mulf %43, %42 : vector<8x128xf32>
    %cst_23 = arith.constant 5.000000e-01 : f32
    %45 = vector.broadcast %cst_23 : f32 to vector<8x128xf32>
    %46 = arith.addf %44, %45 : vector<8x128xf32>
    %47 = arith.truncf %46 : vector<8x128xf32> to vector<8x128xbf16>
    %c0_24 = arith.constant 0 : index
    %c0_25 = arith.constant 0 : index
    %48 = vector.load %arg8[%c0_24, %c0_25] : memref<128x128xbf16, #tpu.memory_space<vmem>>, vector<128x128xbf16>
    %cst_26 = arith.constant dense<0.000000e+00> : vector<8x128xf32>
    %49 = tpu.matmul %47, %48, %cst_26 {dimension_numbers = #tpu.dot_dimension_numbers<[1], [0], [0], [1], [0, 0, 1, 1], [], []>} : vector<8x128xbf16>, vector<128x128xbf16>, vector<8x128xf32> -> vector<8x128xf32>
    %c0_27 = arith.constant 0 : index
    %c0_28 = arith.constant 0 : index
    %50 = vector.load %arg9[%c0_27, %c0_28] : memref<1x128xf32, #tpu.memory_space<vmem>>, vector<1x128xf32>
    %51 = vector.broadcast %50 : vector<1x128xf32> to vector<8x128xf32>
    %52 = arith.addf %49, %51 : vector<8x128xf32>
    %cst_29 = arith.constant 5.000000e-01 : f32
    %53 = vector.broadcast %cst_29 : f32 to vector<8x128xf32>
    %54 = arith.mulf %53, %52 : vector<8x128xf32>
    %55 = math.tanh %54 : vector<8x128xf32>
    %cst_30 = arith.constant 5.000000e-01 : f32
    %56 = vector.broadcast %cst_30 : f32 to vector<8x128xf32>
    %57 = arith.mulf %56, %55 : vector<8x128xf32>
    %cst_31 = arith.constant 5.000000e-01 : f32
    %58 = vector.broadcast %cst_31 : f32 to vector<8x128xf32>
    %59 = arith.addf %57, %58 : vector<8x128xf32>
    %60 = arith.truncf %59 : vector<8x128xf32> to vector<8x128xbf16>
    %c0_32 = arith.constant 0 : index
    %c0_33 = arith.constant 0 : index
    %61 = vector.load %arg10[%c0_32, %c0_33] : memref<128x640xbf16, #tpu.memory_space<vmem>>, vector<128x640xbf16>
    %cst_34 = arith.constant dense<0.000000e+00> : vector<8x640xf32>
    %62 = tpu.matmul %60, %61, %cst_34 {dimension_numbers = #tpu.dot_dimension_numbers<[1], [0], [0], [1], [0, 0, 1, 1], [], []>} : vector<8x128xbf16>, vector<128x640xbf16>, vector<8x640xf32> -> vector<8x640xf32>
    %c0_35 = arith.constant 0 : index
    %c0_36 = arith.constant 0 : index
    %63 = vector.load %arg11[%c0_35, %c0_36] : memref<1x640xf32, #tpu.memory_space<vmem>>, vector<1x640xf32>
    %64 = vector.broadcast %63 : vector<1x640xf32> to vector<8x640xf32>
    %65 = arith.addf %62, %64 : vector<8x640xf32>
    %cst_37 = arith.constant 5.000000e-01 : f32
    %66 = vector.broadcast %cst_37 : f32 to vector<8x640xf32>
    %67 = arith.mulf %66, %65 : vector<8x640xf32>
    %68 = math.tanh %67 : vector<8x640xf32>
    %cst_38 = arith.constant 5.000000e-01 : f32
    %69 = vector.broadcast %cst_38 : f32 to vector<8x640xf32>
    %70 = arith.mulf %69, %68 : vector<8x640xf32>
    %cst_39 = arith.constant 5.000000e-01 : f32
    %71 = vector.broadcast %cst_39 : f32 to vector<8x640xf32>
    %72 = arith.addf %70, %71 : vector<8x640xf32>
    %73 = arith.truncf %72 : vector<8x640xf32> to vector<8x640xbf16>
    %c0_40 = arith.constant 0 : index
    %c0_41 = arith.constant 0 : index
    %74 = vector.load %arg12[%c0_40, %c0_41] : memref<640x256xbf16, #tpu.memory_space<vmem>>, vector<640x256xbf16>
    %cst_42 = arith.constant dense<0.000000e+00> : vector<8x256xf32>
    %75 = tpu.matmul %73, %74, %cst_42 {dimension_numbers = #tpu.dot_dimension_numbers<[1], [0], [0], [1], [0, 0, 1, 1], [], []>} : vector<8x640xbf16>, vector<640x256xbf16>, vector<8x256xf32> -> vector<8x256xf32>
    %c0_43 = arith.constant 0 : index
    %c0_44 = arith.constant 0 : index
    %76 = vector.load %arg13[%c0_43, %c0_44] : memref<1x256xf32, #tpu.memory_space<vmem>>, vector<1x256xf32>
    %77 = vector.broadcast %76 : vector<1x256xf32> to vector<8x256xf32>
    %78 = arith.addf %75, %77 : vector<8x256xf32>
    %cst_45 = arith.constant 5.000000e-01 : f32
    %79 = vector.broadcast %cst_45 : f32 to vector<8x256xf32>
    %80 = arith.mulf %79, %78 : vector<8x256xf32>
    %81 = math.tanh %80 : vector<8x256xf32>
    %cst_46 = arith.constant 5.000000e-01 : f32
    %82 = vector.broadcast %cst_46 : f32 to vector<8x256xf32>
    %83 = arith.mulf %82, %81 : vector<8x256xf32>
    %cst_47 = arith.constant 5.000000e-01 : f32
    %84 = vector.broadcast %cst_47 : f32 to vector<8x256xf32>
    %85 = arith.addf %83, %84 : vector<8x256xf32>
    %c0_48 = arith.constant 0 : index
    %c0_49 = arith.constant 0 : index
    %86 = vector.load %arg14[%c0_48, %c0_49] : memref<8x256xf32, #tpu.memory_space<vmem>>, vector<8x256xf32>
    tpu.vector_store %arg14[%c0_48, %c0_49], %85 {strides = array<i32>} : memref<8x256xf32, #tpu.memory_space<vmem>>, vector<8x256xf32>,
    return
  }
  func.func @transform_0(%arg0: i32) -> (i32, i32) {
    %c0_i32 = arith.constant 0 : i32
    %c0_i32_0 = arith.constant 0 : i32
    return %arg0, %c0_i32 : i32, i32
  }
  func.func @transform_1(%arg0: i32) -> (i32, i32) {
    %c0_i32 = arith.constant 0 : i32
    %c0_i32_0 = arith.constant 0 : i32
    %c0_i32_1 = arith.constant 0 : i32
    return %c0_i32, %c0_i32_0 : i32, i32
  }
  func.func @transform_2(%arg0: i32) -> (i32, i32) {
    %c0_i32 = arith.constant 0 : i32
    %c0_i32_0 = arith.constant 0 : i32
    %c0_i32_1 = arith.constant 0 : i32
    return %c0_i32, %c0_i32_0 : i32, i32
  }
  func.func @transform_3(%arg0: i32) -> (i32, i32) {
    %c0_i32 = arith.constant 0 : i32
    %c0_i32_0 = arith.constant 0 : i32
    %c0_i32_1 = arith.constant 0 : i32
    return %c0_i32, %c0_i32_0 : i32, i32
  }
  func.func @transform_4(%arg0: i32) -> (i32, i32) {
    %c0_i32 = arith.constant 0 : i32
    %c0_i32_0 = arith.constant 0 : i32
    %c0_i32_1 = arith.constant 0 : i32
    return %c0_i32, %c0_i32_0 : i32, i32
  }
  func.func @transform_5(%arg0: i32) -> (i32, i32) {
    %c0_i32 = arith.constant 0 : i32
    %c0_i32_0 = arith.constant 0 : i32
    %c0_i32_1 = arith.constant 0 : i32
    return %c0_i32, %c0_i32_0 : i32, i32
  }
  func.func @transform_6(%arg0: i32) -> (i32, i32) {
    %c0_i32 = arith.constant 0 : i32
    %c0_i32_0 = arith.constant 0 : i32
    %c0_i32_1 = arith.constant 0 : i32
    return %c0_i32, %c0_i32_0 : i32, i32
  }
  func.func @transform_7(%arg0: i32) -> (i32, i32) {
    %c0_i32 = arith.constant 0 : i32
    %c0_i32_0 = arith.constant 0 : i32
    %c0_i32_1 = arith.constant 0 : i32
    return %c0_i32, %c0_i32_0 : i32, i32
  }
  func.func @transform_8(%arg0: i32) -> (i32, i32) {
    %c0_i32 = arith.constant 0 : i32
    %c0_i32_0 = arith.constant 0 : i32
    %c0_i32_1 = arith.constant 0 : i32
    return %c0_i32, %c0_i32_0 : i32, i32
  }
  func.func @transform_9(%arg0: i32) -> (i32, i32) {
    %c0_i32 = arith.constant 0 : i32
    %c0_i32_0 = arith.constant 0 : i32
    %c0_i32_1 = arith.constant 0 : i32
    return %c0_i32, %c0_i32_0 : i32, i32
  }
  func.func @transform_10(%arg0: i32) -> (i32, i32) {
    %c0_i32 = arith.constant 0 : i32
    %c0_i32_0 = arith.constant 0 : i32
    %c0_i32_1 = arith.constant 0 : i32
    return %c0_i32, %c0_i32_0 : i32, i32
  }
  func.func @transform_11(%arg0: i32) -> (i32, i32) {
    %c0_i32 = arith.constant 0 : i32
    %c0_i32_0 = arith.constant 0 : i32
    %c0_i32_1 = arith.constant 0 : i32
    return %c0_i32, %c0_i32_0 : i32, i32
  }
  func.func @transform_12(%arg0: i32) -> (i32, i32) {
    %c0_i32 = arith.constant 0 : i32
    %c0_i32_0 = arith.constant 0 : i32
    %c0_i32_1 = arith.constant 0 : i32
    return %c0_i32, %c0_i32_0 : i32, i32
  }
  func.func @transform_13(%arg0: i32) -> (i32, i32) {
    %c0_i32 = arith.constant 0 : i32
    %c0_i32_0 = arith.constant 0 : i32
    return %arg0, %c0_i32 : i32, i32
  }
}

</mosaic_0001>

<llo_original>
// kernel: autoencoder_forward.1
$region0: #{autoencoder_forward.1}
  #allocation0 [shape = 'u32[]', space=smem, size = 0x4, offset = 0x4, fixed_abs, tag = 'smem constant byte address 0x4 - core index']
  #allocation1 [shape = 'u32[72,128]{1,0:T(1,128)}', space=vmem, size = 0x9000, scoped, tag = 'internal scratch']
  %s0 = inlined_call_operand.vmem [shape: f32[8,256], index: 0, kind: input, shape index: {}]
  %s1 = inlined_call_operand.hbm [shape: bf16[256,1024], index: 1, kind: input, shape index: {}]
  %s2 = inlined_call_operand.hbm [shape: f32[1,256], index: 2, kind: input, shape index: {}]
  %s3 = inlined_call_operand.hbm [shape: bf16[256,128], index: 3, kind: input, shape index: {}]
  %s4 = inlined_call_operand.hbm [shape: f32[1,128], index: 4, kind: input, shape index: {}]
  %s5 = inlined_call_operand.hbm [shape: bf16[128,128], index: 5, kind: input, shape index: {}]
  %s6 = inlined_call_operand.hbm [shape: f32[1,128], index: 6, kind: input, shape index: {}]
  %s7 = inlined_call_operand.vmem [shape: bf16[128,128], index: 7, kind: input, shape index: {}]
  %s8 = inlined_call_operand.hbm [shape: f32[1,128], index: 8, kind: input, shape index: {}]
  %s9 = inlined_call_operand.hbm [shape: bf16[128,640], index: 9, kind: input, shape index: {}]
  %s10 = inlined_call_operand.hbm [shape: f32[1,640], index: 10, kind: input, shape index: {}]
  %s11 = inlined_call_operand.hbm [shape: bf16[640,256], index: 11, kind: input, shape index: {}]
  %s12 = inlined_call_operand.hbm [shape: f32[1,256], index: 12, kind: input, shape index: {}]
  %s13 = inlined_call_operand.vmem [shape: f32[8,256], index: 13, kind: output, shape index: {}]
  %s14 = sld [smem:[#allocation0]]
  $region106: #{autoencoder_forward.1} parent=0
    _
  %s16 = ssub.s32 1, %s14
  %s17 = scalar_select 0, %s16, %s14
  $region1: #{autoencoder_forward.1} parent=0
    #allocation2 [shape = 'u8[524288]{0}', space=vmem, size = 0x80000, scoped, tag = 'input window, operand 1, single buffered']
    #allocation3 [shape = 's32[1]{0}', space=sflag, size = 0x4, scoped, tag = 'scoped memory for autoencoder_forward.1']
    #allocation4 [shape = 'u8[1024]{0}', space=vmem, size = 0x400, scoped, tag = 'input window, operand 2, single buffered']
    #allocation5 [shape = 's32[1]{0}', space=sflag, size = 0x4, scoped, tag = 'scoped memory for autoencoder_forward.1']
    #allocation6 [shape = 'u8[65536]{0}', space=vmem, size = 0x10000, scoped, tag = 'input window, operand 3, single buffered']
    #allocation7 [shape = 'u8[512]{0}', space=vmem, size = 0x400, scoped, tag = 'input window, operand 4, single buffered']
    #allocation8 [shape = 's32[1]{0}', space=sflag, size = 0x4, scoped, tag = 'scoped memory for autoencoder_forward.1']
    #allocation9 [shape = 'u8[32768]{0}', space=vmem, size = 0x8000, scoped, tag = 'input window, operand 5, single buffered']
    #allocation10 [shape = 'u8[512]{0}', space=vmem, size = 0x400, scoped, tag = 'input window, operand 6, single buffered']
    #allocation11 [shape = 's32[1]{0}', space=sflag, size = 0x4, scoped, tag = 'scoped memory for autoencoder_forward.1']
    #allocation12 [shape = 'u8[512]{0}', space=vmem, size = 0x400, scoped, tag = 'input window, operand 8, single buffered']
    #allocation13 [shape = 'u8[163840]{0}', space=vmem, size = 0x28000, scoped, tag = 'input window, operand 9, single buffered']
    #allocation14 [shape = 's32[1]{0}', space=sflag, size = 0x4, scoped, tag = 'scoped memory for autoencoder_forward.1']
    #allocation15 [shape = 'u8[2560]{0}', space=vmem, size = 0xc00, scoped, tag = 'input window, operand 10, single buffered']
    #allocation16 [shape = 'u8[327680]{0}', space=vmem, size = 0x50000, scoped, tag = 'input window, operand 11, single buffered']
    #allocation17 [shape = 's32[1]{0}', space=sflag, size = 0x4, scoped, tag = 'scoped memory for autoencoder_forward.1']
    #allocation18 [shape = 'u8[1024]{0}', space=vmem, size = 0x400, scoped, tag = 'input window, operand 12, single buffered']
    %18 = vsyncpa [#allocation3], 0
    %19 = vsyncpa [#allocation5], 0
    %20 = vsyncpa [#allocation8], 0
    %21 = vsyncpa [#allocation11], 0
    %22 = vsyncpa [#allocation14], 0
    %23 = vsyncpa [#allocation17], 0
    // Predicated region
    $region2: #{autoencoder_forward.1} parent=1 // pred_check
      _
    $region3: #{autoencoder_forward.1} parent=1 // pred_check_branch
      %25 = sbr.rel (0) target = $region5
    $region4: #{autoencoder_forward.1} parent=1 // pred_region
      _
    $region5: #{autoencoder_forward.1} parent=1 // pred_fallthru
      _
    // Predicated region
    $region6: #{autoencoder_forward.1} parent=1 // pred_check
      _
    $region7: #{autoencoder_forward.1} parent=1 // pred_check_branch
      %27 = sbr.rel (0) target = $region9
    $region8: #{autoencoder_forward.1} parent=1 // pred_region
      %29 = vsyncadd [#allocation3], 0
      %s30 = sshll.u32 %s1, 4
      %s31 = int_to_ptr.hbm [resolvable:$true] %s30
      %s32 = sshll.u32 [#allocation2], 4
      %s33 = int_to_ptr.vmem [resolvable:$true] %s32
      %38 = dma.hbm_to_vmem [thread:$0]  %s31, 16384, %s33, [#allocation3], 512, 512, 32
    $region9: #{autoencoder_forward.1} parent=1 // pred_fallthru
      _
    // Predicated region
    $region10: #{autoencoder_forward.1} parent=1 // pred_check
      _
    $region11: #{autoencoder_forward.1} parent=1 // pred_check_branch
      %40 = sbr.rel (0) target = $region13
    $region12: #{autoencoder_forward.1} parent=1 // pred_region
      %42 = vsyncadd [#allocation5], 0
      %s44 = sshll.u32 %s2, 4
      %s45 = int_to_ptr.hbm [resolvable:$true] %s44
      %s46 = sshll.u32 [#allocation4], 4
      %s47 = int_to_ptr.vmem [resolvable:$true] %s46
      %49 = dma.hbm_to_vmem [thread:$0]  %s45, 32, %s47, [#allocation5]
    $region13: #{autoencoder_forward.1} parent=1 // pred_fallthru
      _
    // Predicated region
    $region14: #{autoencoder_forward.1} parent=1 // pred_check
      _
    $region15: #{autoencoder_forward.1} parent=1 // pred_check_branch
      %51 = sbr.rel (0) target = $region17
    $region16: #{autoencoder_forward.1} parent=1 // pred_region
      %53 = vsyncadd [#allocation5], 0
      %s54 = sshll.u32 %s3, 4
      %s55 = int_to_ptr.hbm [resolvable:$true] %s54
      %s56 = sshll.u32 [#allocation6], 4
      %s57 = int_to_ptr.vmem [resolvable:$true] %s56
      %62 = dma.hbm_to_vmem [thread:$0]  %s55, 2048, %s57, [#allocation5], 64, 64, 4
    $region17: #{autoencoder_forward.1} parent=1 // pred_fallthru
      _
    // Predicated region
    $region18: #{autoencoder_forward.1} parent=1 // pred_check
      _
    $region19: #{autoencoder_forward.1} parent=1 // pred_check_branch
      %64 = sbr.rel (0) target = $region21
    $region20: #{autoencoder_forward.1} parent=1 // pred_region
      %66 = vsyncadd [#allocation8], 0
      %s68 = sshll.u32 %s4, 4
      %s69 = int_to_ptr.hbm [resolvable:$true] %s68
      %s70 = sshll.u32 [#allocation7], 4
      %s71 = int_to_ptr.vmem [resolvable:$true] %s70
      %73 = dma.hbm_to_vmem [thread:$0]  %s69, 16, %s71, [#allocation8]
    $region21: #{autoencoder_forward.1} parent=1 // pred_fallthru
      _
    // Predicated region
    $region22: #{autoencoder_forward.1} parent=1 // pred_check
      _
    $region23: #{autoencoder_forward.1} parent=1 // pred_check_branch
      %75 = sbr.rel (0) target = $region25
    $region24: #{autoencoder_forward.1} parent=1 // pred_region
      %77 = vsyncadd [#allocation8], 0
      %s78 = sshll.u32 %s5, 4
      %s79 = int_to_ptr.hbm [resolvable:$true] %s78
      %s80 = sshll.u32 [#allocation9], 4
      %s81 = int_to_ptr.vmem [resolvable:$true] %s80
      %86 = dma.hbm_to_vmem [thread:$0]  %s79, 1024, %s81, [#allocation8], 64, 64, 4
    $region25: #{autoencoder_forward.1} parent=1 // pred_fallthru
      _
    // Predicated region
    $region26: #{autoencoder_forward.1} parent=1 // pred_check
      _
    $region27: #{autoencoder_forward.1} parent=1 // pred_check_branch
      %88 = sbr.rel (0) target = $region29
    $region28: #{autoencoder_forward.1} parent=1 // pred_region
      %90 = vsyncadd [#allocation11], 0
      %s92 = sshll.u32 %s6, 4
      %s93 = int_to_ptr.hbm [resolvable:$true] %s92
      %s94 = sshll.u32 [#allocation10], 4
      %s95 = int_to_ptr.vmem [resolvable:$true] %s94
      %97 = dma.hbm_to_vmem [thread:$0]  %s93, 16, %s95, [#allocation11]
    $region29: #{autoencoder_forward.1} parent=1 // pred_fallthru
      _
    // Predicated region
    $region30: #{autoencoder_forward.1} parent=1 // pred_check
      _
    $region31: #{autoencoder_forward.1} parent=1 // pred_check_branch
      %99 = sbr.rel (0) target = $region33
    $region32: #{autoencoder_forward.1} parent=1 // pred_region
      _
    $region33: #{autoencoder_forward.1} parent=1 // pred_fallthru
      _
    // Predicated region
    $region34: #{autoencoder_forward.1} parent=1 // pred_check
      _
    $region35: #{autoencoder_forward.1} parent=1 // pred_check_branch
      %101 = sbr.rel (0) target = $region37
    $region36: #{autoencoder_forward.1} parent=1 // pred_region
      %103 = vsyncadd [#allocation11], 0
      %s105 = sshll.u32 %s8, 4
      %s106 = int_to_ptr.hbm [resolvable:$true] %s105
      %s107 = sshll.u32 [#allocation12], 4
      %s108 = int_to_ptr.vmem [resolvable:$true] %s107
      %110 = dma.hbm_to_vmem [thread:$0]  %s106, 16, %s108, [#allocation11]
    $region37: #{autoencoder_forward.1} parent=1 // pred_fallthru
      _
    // Predicated region
    $region38: #{autoencoder_forward.1} parent=1 // pred_check
      _
    $region39: #{autoencoder_forward.1} parent=1 // pred_check_branch
      %112 = sbr.rel (0) target = $region41
    $region40: #{autoencoder_forward.1} parent=1 // pred_region
      %114 = vsyncadd [#allocation14], 0
      %s115 = sshll.u32 %s9, 4
      %s116 = int_to_ptr.hbm [resolvable:$true] %s115
      %s117 = sshll.u32 [#allocation13], 4
      %s118 = int_to_ptr.vmem [resolvable:$true] %s117
      %123 = dma.hbm_to_vmem [thread:$0]  %s116, 5120, %s118, [#allocation14], 320, 320, 20
    $region41: #{autoencoder_forward.1} parent=1 // pred_fallthru
      _
    // Predicated region
    $region42: #{autoencoder_forward.1} parent=1 // pred_check
      _
    $region43: #{autoencoder_forward.1} parent=1 // pred_check_branch
      %125 = sbr.rel (0) target = $region45
    $region44: #{autoencoder_forward.1} parent=1 // pred_region
      %127 = vsyncadd [#allocation14], 0
      %s129 = sshll.u32 %s10, 4
      %s130 = int_to_ptr.hbm [resolvable:$true] %s129
      %s131 = sshll.u32 [#allocation15], 4
      %s132 = int_to_ptr.vmem [resolvable:$true] %s131
      %134 = dma.hbm_to_vmem [thread:$0]  %s130, 80, %s132, [#allocation14]
    $region45: #{autoencoder_forward.1} parent=1 // pred_fallthru
      _
    // Predicated region
    $region46: #{autoencoder_forward.1} parent=1 // pred_check
      _
    $region47: #{autoencoder_forward.1} parent=1 // pred_check_branch
      %136 = sbr.rel (0) target = $region49
    $region48: #{autoencoder_forward.1} parent=1 // pred_region
      %138 = vsyncadd [#allocation17], 0
      %s139 = sshll.u32 %s11, 4
      %s140 = int_to_ptr.hbm [resolvable:$true] %s139
      %s141 = sshll.u32 [#allocation16], 4
      %s142 = int_to_ptr.vmem [resolvable:$true] %s141
      %147 = dma.hbm_to_vmem [thread:$0]  %s140, 10240, %s142, [#allocation17], 128, 128, 8
    $region49: #{autoencoder_forward.1} parent=1 // pred_fallthru
      _
    // Predicated region
    $region50: #{autoencoder_forward.1} parent=1 // pred_check
      _
    $region51: #{autoencoder_forward.1} parent=1 // pred_check_branch
      %149 = sbr.rel (0) target = $region53
    $region52: #{autoencoder_forward.1} parent=1 // pred_region
      %151 = vsyncadd [#allocation17], 0
      %s153 = sshll.u32 %s12, 4
      %s154 = int_to_ptr.hbm [resolvable:$true] %s153
      %s155 = sshll.u32 [#allocation18], 4
      %s156 = int_to_ptr.vmem [resolvable:$true] %s155
      %158 = dma.hbm_to_vmem [thread:$0]  %s154, 32, %s156, [#allocation17]
    $region53: #{autoencoder_forward.1} parent=1 // pred_fallthru
      _
    // Predicated region
    $region54: #{autoencoder_forward.1} parent=1 // pred_check
      _
    $region55: #{autoencoder_forward.1} parent=1 // pred_check_branch
      %160 = sbr.rel (0) target = $region57
    $region56: #{autoencoder_forward.1} parent=1 // pred_region
      %162 = dma.done [#allocation3], 16384
    $region57: #{autoencoder_forward.1} parent=1 // pred_fallthru
      _
    // Predicated region
    $region58: #{autoencoder_forward.1} parent=1 // pred_check
      _
    $region59: #{autoencoder_forward.1} parent=1 // pred_check_branch
      %164 = sbr.rel (0) target = $region61
    $region60: #{autoencoder_forward.1} parent=1 // pred_region
      %166 = dma.done [#allocation5], 32
    $region61: #{autoencoder_forward.1} parent=1 // pred_fallthru
      _
    // Predicated region
    $region62: #{autoencoder_forward.1} parent=1 // pred_check
      _
    $region63: #{autoencoder_forward.1} parent=1 // pred_check_branch
      %168 = sbr.rel (0) target = $region65
    $region64: #{autoencoder_forward.1} parent=1 // pred_region
      %170 = dma.done [#allocation5], 2048
    $region65: #{autoencoder_forward.1} parent=1 // pred_fallthru
      _
    // Predicated region
    $region66: #{autoencoder_forward.1} parent=1 // pred_check
      _
    $region67: #{autoencoder_forward.1} parent=1 // pred_check_branch
      %172 = sbr.rel (0) target = $region69
    $region68: #{autoencoder_forward.1} parent=1 // pred_region
      %174 = dma.done [#allocation8], 16
    $region69: #{autoencoder_forward.1} parent=1 // pred_fallthru
      _
    // Predicated region
    $region70: #{autoencoder_forward.1} parent=1 // pred_check
      _
    $region71: #{autoencoder_forward.1} parent=1 // pred_check_branch
      %176 = sbr.rel (0) target = $region73
    $region72: #{autoencoder_forward.1} parent=1 // pred_region
      %178 = dma.done [#allocation8], 1024
    $region73: #{autoencoder_forward.1} parent=1 // pred_fallthru
      _
    // Predicated region
    $region74: #{autoencoder_forward.1} parent=1 // pred_check
      _
    $region75: #{autoencoder_forward.1} parent=1 // pred_check_branch
      %180 = sbr.rel (0) target = $region77
    $region76: #{autoencoder_forward.1} parent=1 // pred_region
      %182 = dma.done [#allocation11], 16
    $region77: #{autoencoder_forward.1} parent=1 // pred_fallthru
      _
    // Predicated region
    $region78: #{autoencoder_forward.1} parent=1 // pred_check
      _
    $region79: #{autoencoder_forward.1} parent=1 // pred_check_branch
      %184 = sbr.rel (0) target = $region81
    $region80: #{autoencoder_forward.1} parent=1 // pred_region
      %186 = dma.done [#allocation11], 16
    $region81: #{autoencoder_forward.1} parent=1 // pred_fallthru
      _
    // Predicated region
    $region82: #{autoencoder_forward.1} parent=1 // pred_check
      _
    $region83: #{autoencoder_forward.1} parent=1 // pred_check_branch
      %188 = sbr.rel (0) target = $region85
    $region84: #{autoencoder_forward.1} parent=1 // pred_region
      %190 = dma.done [#allocation14], 5120
    $region85: #{autoencoder_forward.1} parent=1 // pred_fallthru
      _
    // Predicated region
    $region86: #{autoencoder_forward.1} parent=1 // pred_check
      _
    $region87: #{autoencoder_forward.1} parent=1 // pred_check_branch
      %192 = sbr.rel (0) target = $region89
    $region88: #{autoencoder_forward.1} parent=1 // pred_region
      %194 = dma.done [#allocation14], 80
    $region89: #{autoencoder_forward.1} parent=1 // pred_fallthru
      _
    // Predicated region
    $region90: #{autoencoder_forward.1} parent=1 // pred_check
      _
    $region91: #{autoencoder_forward.1} parent=1 // pred_check_branch
      %196 = sbr.rel (0) target = $region93
    $region92: #{autoencoder_forward.1} parent=1 // pred_region
      %198 = dma.done [#allocation17], 10240
    $region93: #{autoencoder_forward.1} parent=1 // pred_fallthru
      _
    // Predicated region
    $region94: #{autoencoder_forward.1} parent=1 // pred_check
      _
    $region95: #{autoencoder_forward.1} parent=1 // pred_check_branch
      %200 = sbr.rel (0) target = $region97
    $region96: #{autoencoder_forward.1} parent=1 // pred_region
      %202 = dma.done [#allocation17], 32
    $region97: #{autoencoder_forward.1} parent=1 // pred_fallthru
      _
    %v203 = vld [vmem:[%s0] sm:$0xff]
    %v204 = vld [vmem:[%s0 + $0x8] sm:$0xff]
    %v205 = vpack.c.bf16 %v203, %v203
    %v206 = vpack.c.bf16 %v204, %v204
    %v207 = vld [vmem:[#allocation2] sm:$0xff]
    %v208 = vld [vmem:[#allocation2 + $0x8] sm:$0xff]
    %v209 = vld [vmem:[#allocation2 + $0x10] sm:$0xff]
    %v210 = vld [vmem:[#allocation2 + $0x18] sm:$0xff]
    %v211 = vld [vmem:[#allocation2 + $0x20] sm:$0xff]
    %v212 = vld [vmem:[#allocation2 + $0x28] sm:$0xff]
    %v213 = vld [vmem:[#allocation2 + $0x30] sm:$0xff]
    %v214 = vld [vmem:[#allocation2 + $0x38] sm:$0xff]
    %v215 = vld [vmem:[#allocation2 + $0x40] sm:$0xff]
    %v216 = vld [vmem:[#allocation2 + $0x48] sm:$0xff]
    %v217 = vld [vmem:[#allocation2 + $0x50] sm:$0xff]
    %v218 = vld [vmem:[#allocation2 + $0x58] sm:$0xff]
    %v219 = vld [vmem:[#allocation2 + $0x60] sm:$0xff]
    %v220 = vld [vmem:[#allocation2 + $0x68] sm:$0xff]
    %v221 = vld [vmem:[#allocation2 + $0x70] sm:$0xff]
    %v222 = vld [vmem:[#allocation2 + $0x78] sm:$0xff]
    %v223 = vld [vmem:[#allocation2 + $0x80] sm:$0xff]
    %v224 = vld [vmem:[#allocation2 + $0x88] sm:$0xff]
    %v225 = vld [vmem:[#allocation2 + $0x90] sm:$0xff]
    %v226 = vld [vmem:[#allocation2 + $0x98] sm:$0xff]
    %v227 = vld [vmem:[#allocation2 + $0xa0] sm:$0xff]
    %v228 = vld [vmem:[#allocation2 + $0xa8] sm:$0xff]
    %v229 = vld [vmem:[#allocation2 + $0xb0] sm:$0xff]
    %v230 = vld [vmem:[#allocation2 + $0xb8] sm:$0xff]
    %v231 = vld [vmem:[#allocation2 + $0xc0] sm:$0xff]
    %v232 = vld [vmem:[#allocation2 + $0xc8] sm:$0xff]
    %v233 = vld [vmem:[#allocation2 + $0xd0] sm:$0xff]
    %v234 = vld [vmem:[#allocation2 + $0xd8] sm:$0xff]
    %v235 = vld [vmem:[#allocation2 + $0xe0] sm:$0xff]
    %v236 = vld [vmem:[#allocation2 + $0xe8] sm:$0xff]
    %v237 = vld [vmem:[#allocation2 + $0xf0] sm:$0xff]
    %v238 = vld [vmem:[#allocation2 + $0xf8] sm:$0xff]
    %v239 = vld [vmem:[#allocation2 + $0x100] sm:$0xff]
    %v240 = vld [vmem:[#allocation2 + $0x108] sm:$0xff]
    %v241 = vld [vmem:[#allocation2 + $0x110] sm:$0xff]
    %v242 = vld [vmem:[#allocation2 + $0x118] sm:$0xff]
    %v243 = vld [vmem:[#allocation2 + $0x120] sm:$0xff]
    %v244 = vld [vmem:[#allocation2 + $0x128] sm:$0xff]
    %v245 = vld [vmem:[#allocation2 + $0x130] sm:$0xff]
    %v246 = vld [vmem:[#allocation2 + $0x138] sm:$0xff]
    %v247 = vld [vmem:[#allocation2 + $0x140] sm:$0xff]
    %v248 = vld [vmem:[#allocation2 + $0x148] sm:$0xff]
    %v249 = vld [vmem:[#allocation2 + $0x150] sm:$0xff]
    %v250 = vld [vmem:[#allocation2 + $0x158] sm:$0xff]
    %v251 = vld [vmem:[#allocation2 + $0x160] sm:$0xff]
    %v252 = vld [vmem:[#allocation2 + $0x168] sm:$0xff]
    %v253 = vld [vmem:[#allocation2 + $0x170] sm:$0xff]
    %v254 = vld [vmem:[#allocation2 + $0x178] sm:$0xff]
    %v255 = vld [vmem:[#allocation2 + $0x180] sm:$0xff]
    %v256 = vld [vmem:[#allocation2 + $0x188] sm:$0xff]
    %v257 = vld [vmem:[#allocation2 + $0x190] sm:$0xff]
    %v258 = vld [vmem:[#allocation2 + $0x198] sm:$0xff]
    %v259 = vld [vmem:[#allocation2 + $0x1a0] sm:$0xff]
    %v260 = vld [vmem:[#allocation2 + $0x1a8] sm:$0xff]
    %v261 = vld [vmem:[#allocation2 + $0x1b0] sm:$0xff]
    %v262 = vld [vmem:[#allocation2 + $0x1b8] sm:$0xff]
    %v263 = vld [vmem:[#allocation2 + $0x1c0] sm:$0xff]
    %v264 = vld [vmem:[#allocation2 + $0x1c8] sm:$0xff]
    %v265 = vld [vmem:[#allocation2 + $0x1d0] sm:$0xff]
    %v266 = vld [vmem:[#allocation2 + $0x1d8] sm:$0xff]
    %v267 = vld [vmem:[#allocation2 + $0x1e0] sm:$0xff]
    %v268 = vld [vmem:[#allocation2 + $0x1e8] sm:$0xff]
    %v269 = vld [vmem:[#allocation2 + $0x1f0] sm:$0xff]
    %v270 = vld [vmem:[#allocation2 + $0x1f8] sm:$0xff]
    %v271 = vld [vmem:[#allocation2 + $0x200] sm:$0xff]
    %v272 = vld [vmem:[#allocation2 + $0x208] sm:$0xff]
    %v273 = vld [vmem:[#allocation2 + $0x210] sm:$0xff]
    %v274 = vld [vmem:[#allocation2 + $0x218] sm:$0xff]
    %v275 = vld [vmem:[#allocation2 + $0x220] sm:$0xff]
    %v276 = vld [vmem:[#allocation2 + $0x228] sm:$0xff]
    %v277 = vld [vmem:[#allocation2 + $0x230] sm:$0xff]
    %v278 = vld [vmem:[#allocation2 + $0x238] sm:$0xff]
    %v279 = vld [vmem:[#allocation2 + $0x240] sm:$0xff]
    %v280 = vld [vmem:[#allocation2 + $0x248] sm:$0xff]
    %v281 = vld [vmem:[#allocation2 + $0x250] sm:$0xff]
    %v282 = vld [vmem:[#allocation2 + $0x258] sm:$0xff]
    %v283 = vld [vmem:[#allocation2 + $0x260] sm:$0xff]
    %v284 = vld [vmem:[#allocation2 + $0x268] sm:$0xff]
    %v285 = vld [vmem:[#allocation2 + $0x270] sm:$0xff]
    %v286 = vld [vmem:[#allocation2 + $0x278] sm:$0xff]
    %v287 = vld [vmem:[#allocation2 + $0x280] sm:$0xff]
    %v288 = vld [vmem:[#allocation2 + $0x288] sm:$0xff]
    %v289 = vld [vmem:[#allocation2 + $0x290] sm:$0xff]
    %v290 = vld [vmem:[#allocation2 + $0x298] sm:$0xff]
    %v291 = vld [vmem:[#allocation2 + $0x2a0] sm:$0xff]
    %v292 = vld [vmem:[#allocation2 + $0x2a8] sm:$0xff]
    %v293 = vld [vmem:[#allocation2 + $0x2b0] sm:$0xff]
    %v294 = vld [vmem:[#allocation2 + $0x2b8] sm:$0xff]
    %v295 = vld [vmem:[#allocation2 + $0x2c0] sm:$0xff]
    %v296 = vld [vmem:[#allocation2 + $0x2c8] sm:$0xff]
    %v297 = vld [vmem:[#allocation2 + $0x2d0] sm:$0xff]
    %v298 = vld [vmem:[#allocation2 + $0x2d8] sm:$0xff]
    %v299 = vld [vmem:[#allocation2 + $0x2e0] sm:$0xff]
    %v300 = vld [vmem:[#allocation2 + $0x2e8] sm:$0xff]
    %v301 = vld [vmem:[#allocation2 + $0x2f0] sm:$0xff]
    %v302 = vld [vmem:[#allocation2 + $0x2f8] sm:$0xff]
    %v303 = vld [vmem:[#allocation2 + $0x300] sm:$0xff]
    %v304 = vld [vmem:[#allocation2 + $0x308] sm:$0xff]
    %v305 = vld [vmem:[#allocation2 + $0x310] sm:$0xff]
    %v306 = vld [vmem:[#allocation2 + $0x318] sm:$0xff]
    %v307 = vld [vmem:[#allocation2 + $0x320] sm:$0xff]
    %v308 = vld [vmem:[#allocation2 + $0x328] sm:$0xff]
    %v309 = vld [vmem:[#allocation2 + $0x330] sm:$0xff]
    %v310 = vld [vmem:[#allocation2 + $0x338] sm:$0xff]
    %v311 = vld [vmem:[#allocation2 + $0x340] sm:$0xff]
    %v312 = vld [vmem:[#allocation2 + $0x348] sm:$0xff]
    %v313 = vld [vmem:[#allocation2 + $0x350] sm:$0xff]
    %v314 = vld [vmem:[#allocation2 + $0x358] sm:$0xff]
    %v315 = vld [vmem:[#allocation2 + $0x360] sm:$0xff]
    %v316 = vld [vmem:[#allocation2 + $0x368] sm:$0xff]
    %v317 = vld [vmem:[#allocation2 + $0x370] sm:$0xff]
    %v318 = vld [vmem:[#allocation2 + $0x378] sm:$0xff]
    %v319 = vld [vmem:[#allocation2 + $0x380] sm:$0xff]
    %v320 = vld [vmem:[#allocation2 + $0x388] sm:$0xff]
    %v321 = vld [vmem:[#allocation2 + $0x390] sm:$0xff]
    %v322 = vld [vmem:[#allocation2 + $0x398] sm:$0xff]
    %v323 = vld [vmem:[#allocation2 + $0x3a0] sm:$0xff]
    %v324 = vld [vmem:[#allocation2 + $0x3a8] sm:$0xff]
    %v325 = vld [vmem:[#allocation2 + $0x3b0] sm:$0xff]
    %v326 = vld [vmem:[#allocation2 + $0x3b8] sm:$0xff]
    %v327 = vld [vmem:[#allocation2 + $0x3c0] sm:$0xff]
    %v328 = vld [vmem:[#allocation2 + $0x3c8] sm:$0xff]
    %v329 = vld [vmem:[#allocation2 + $0x3d0] sm:$0xff]
    %v330 = vld [vmem:[#allocation2 + $0x3d8] sm:$0xff]
    %v331 = vld [vmem:[#allocation2 + $0x3e0] sm:$0xff]
    %v332 = vld [vmem:[#allocation2 + $0x3e8] sm:$0xff]
    %v333 = vld [vmem:[#allocation2 + $0x3f0] sm:$0xff]
    %v334 = vld [vmem:[#allocation2 + $0x3f8] sm:$0xff]
    %v463 = vunpack.c.l.b16 %v207
    %v464 = vunpack.c.h.b16 %v207
    %v465 = vunpack.c.l.b16 %v208
    %v466 = vunpack.c.h.b16 %v208
    %v467 = vunpack.c.l.b16 %v209
    %v468 = vunpack.c.h.b16 %v209
    %v469 = vunpack.c.l.b16 %v210
    %v470 = vunpack.c.h.b16 %v210
    %v471 = vunpack.c.l.b16 %v211
    %v472 = vunpack.c.h.b16 %v211
    %v473 = vunpack.c.l.b16 %v212
    %v474 = vunpack.c.h.b16 %v212
    %v475 = vunpack.c.l.b16 %v213
    %v476 = vunpack.c.h.b16 %v213
    %v477 = vunpack.c.l.b16 %v214
    %v478 = vunpack.c.h.b16 %v214
    %v479 = vunpack.c.l.b16 %v215
    %v480 = vunpack.c.h.b16 %v215
    %v481 = vunpack.c.l.b16 %v216
    %v482 = vunpack.c.h.b16 %v216
    %v483 = vunpack.c.l.b16 %v217
    %v484 = vunpack.c.h.b16 %v217
    %v485 = vunpack.c.l.b16 %v218
    %v486 = vunpack.c.h.b16 %v218
    %v487 = vunpack.c.l.b16 %v219
    %v488 = vunpack.c.h.b16 %v219
    %v489 = vunpack.c.l.b16 %v220
    %v490 = vunpack.c.h.b16 %v220
    %v491 = vunpack.c.l.b16 %v221
    %v492 = vunpack.c.h.b16 %v221
    %v493 = vunpack.c.l.b16 %v222
    %v494 = vunpack.c.h.b16 %v222
    %v495 = vunpack.c.l.b16 %v223
    %v496 = vunpack.c.h.b16 %v223
    %v497 = vunpack.c.l.b16 %v224
    %v498 = vunpack.c.h.b16 %v224
    %v499 = vunpack.c.l.b16 %v225
    %v500 = vunpack.c.h.b16 %v225
    %v501 = vunpack.c.l.b16 %v226
    %v502 = vunpack.c.h.b16 %v226
    %v503 = vunpack.c.l.b16 %v227
    %v504 = vunpack.c.h.b16 %v227
    %v505 = vunpack.c.l.b16 %v228
    %v506 = vunpack.c.h.b16 %v228
    %v507 = vunpack.c.l.b16 %v229
    %v508 = vunpack.c.h.b16 %v229
    %v509 = vunpack.c.l.b16 %v230
    %v510 = vunpack.c.h.b16 %v230
    %v511 = vunpack.c.l.b16 %v231
    %v512 = vunpack.c.h.b16 %v231
    %v513 = vunpack.c.l.b16 %v232
    %v514 = vunpack.c.h.b16 %v232
    %v515 = vunpack.c.l.b16 %v233
    %v516 = vunpack.c.h.b16 %v233
    %v517 = vunpack.c.l.b16 %v234
    %v518 = vunpack.c.h.b16 %v234
    %v519 = vunpack.c.l.b16 %v235
    %v520 = vunpack.c.h.b16 %v235
    %v521 = vunpack.c.l.b16 %v236
    %v522 = vunpack.c.h.b16 %v236
    %v523 = vunpack.c.l.b16 %v237
    %v524 = vunpack.c.h.b16 %v237
    %v525 = vunpack.c.l.b16 %v238
    %v526 = vunpack.c.h.b16 %v238
    %v527 = vunpack.c.l.b16 %v239
    %v528 = vunpack.c.h.b16 %v239
    %v529 = vunpack.c.l.b16 %v240
    %v530 = vunpack.c.h.b16 %v240
    %v531 = vunpack.c.l.b16 %v241
    %v532 = vunpack.c.h.b16 %v241
    %v533 = vunpack.c.l.b16 %v242
    %v534 = vunpack.c.h.b16 %v242
    %v535 = vunpack.c.l.b16 %v243
    %v536 = vunpack.c.h.b16 %v243
    %v537 = vunpack.c.l.b16 %v244
    %v538 = vunpack.c.h.b16 %v244
    %v539 = vunpack.c.l.b16 %v245
    %v540 = vunpack.c.h.b16 %v245
    %v541 = vunpack.c.l.b16 %v246
    %v542 = vunpack.c.h.b16 %v246
    %v543 = vunpack.c.l.b16 %v247
    %v544 = vunpack.c.h.b16 %v247
    %v545 = vunpack.c.l.b16 %v248
    %v546 = vunpack.c.h.b16 %v248
    %v547 = vunpack.c.l.b16 %v249
    %v548 = vunpack.c.h.b16 %v249
    %v549 = vunpack.c.l.b16 %v250
    %v550 = vunpack.c.h.b16 %v250
    %v551 = vunpack.c.l.b16 %v251
    %v552 = vunpack.c.h.b16 %v251
    %v553 = vunpack.c.l.b16 %v252
    %v554 = vunpack.c.h.b16 %v252
    %v555 = vunpack.c.l.b16 %v253
    %v556 = vunpack.c.h.b16 %v253
    %v557 = vunpack.c.l.b16 %v254
    %v558 = vunpack.c.h.b16 %v254
    %v559 = vunpack.c.l.b16 %v255
    %v560 = vunpack.c.h.b16 %v255
    %v561 = vunpack.c.l.b16 %v256
    %v562 = vunpack.c.h.b16 %v256
    %v563 = vunpack.c.l.b16 %v257
    %v564 = vunpack.c.h.b16 %v257
    %v565 = vunpack.c.l.b16 %v258
    %v566 = vunpack.c.h.b16 %v258
    %v567 = vunpack.c.l.b16 %v259
    %v568 = vunpack.c.h.b16 %v259
    %v569 = vunpack.c.l.b16 %v260
    %v570 = vunpack.c.h.b16 %v260
    %v571 = vunpack.c.l.b16 %v261
    %v572 = vunpack.c.h.b16 %v261
    %v573 = vunpack.c.l.b16 %v262
    %v574 = vunpack.c.h.b16 %v262
    %v575 = vunpack.c.l.b16 %v263
    %v576 = vunpack.c.h.b16 %v263
    %v577 = vunpack.c.l.b16 %v264
    %v578 = vunpack.c.h.b16 %v264
    %v579 = vunpack.c.l.b16 %v265
    %v580 = vunpack.c.h.b16 %v265
    %v581 = vunpack.c.l.b16 %v266
    %v582 = vunpack.c.h.b16 %v266
    %v583 = vunpack.c.l.b16 %v267
    %v584 = vunpack.c.h.b16 %v267
    %v585 = vunpack.c.l.b16 %v268
    %v586 = vunpack.c.h.b16 %v268
    %v587 = vunpack.c.l.b16 %v269
    %v588 = vunpack.c.h.b16 %v269
    %v589 = vunpack.c.l.b16 %v270
    %v590 = vunpack.c.h.b16 %v270
    %v591 = vunpack.c.l.b16 %v271
    %v592 = vunpack.c.h.b16 %v271
    %v593 = vunpack.c.l.b16 %v272
    %v594 = vunpack.c.h.b16 %v272
    %v595 = vunpack.c.l.b16 %v273
    %v596 = vunpack.c.h.b16 %v273
    %v597 = vunpack.c.l.b16 %v274
    %v598 = vunpack.c.h.b16 %v274
    %v599 = vunpack.c.l.b16 %v275
    %v600 = vunpack.c.h.b16 %v275
    %v601 = vunpack.c.l.b16 %v276
    %v602 = vunpack.c.h.b16 %v276
    %v603 = vunpack.c.l.b16 %v277
    %v604 = vunpack.c.h.b16 %v277
    %v605 = vunpack.c.l.b16 %v278
    %v606 = vunpack.c.h.b16 %v278
    %v607 = vunpack.c.l.b16 %v279
    %v608 = vunpack.c.h.b16 %v279
    %v609 = vunpack.c.l.b16 %v280
    %v610 = vunpack.c.h.b16 %v280
    %v611 = vunpack.c.l.b16 %v281
    %v612 = vunpack.c.h.b16 %v281
    %v613 = vunpack.c.l.b16 %v282
    %v614 = vunpack.c.h.b16 %v282
    %v615 = vunpack.c.l.b16 %v283
    %v616 = vunpack.c.h.b16 %v283
    %v617 = vunpack.c.l.b16 %v284
    %v618 = vunpack.c.h.b16 %v284
    %v619 = vunpack.c.l.b16 %v285
    %v620 = vunpack.c.h.b16 %v285
    %v621 = vunpack.c.l.b16 %v286
    %v622 = vunpack.c.h.b16 %v286
    %v623 = vunpack.c.l.b16 %v287
    %v624 = vunpack.c.h.b16 %v287
    %v625 = vunpack.c.l.b16 %v288
    %v626 = vunpack.c.h.b16 %v288
    %v627 = vunpack.c.l.b16 %v289
    %v628 = vunpack.c.h.b16 %v289
    %v629 = vunpack.c.l.b16 %v290
    %v630 = vunpack.c.h.b16 %v290
    %v631 = vunpack.c.l.b16 %v291
    %v632 = vunpack.c.h.b16 %v291
    %v633 = vunpack.c.l.b16 %v292
    %v634 = vunpack.c.h.b16 %v292
    %v635 = vunpack.c.l.b16 %v293
    %v636 = vunpack.c.h.b16 %v293
    %v637 = vunpack.c.l.b16 %v294
    %v638 = vunpack.c.h.b16 %v294
    %v639 = vunpack.c.l.b16 %v295
    %v640 = vunpack.c.h.b16 %v295
    %v641 = vunpack.c.l.b16 %v296
    %v642 = vunpack.c.h.b16 %v296
    %v643 = vunpack.c.l.b16 %v297
    %v644 = vunpack.c.h.b16 %v297
    %v645 = vunpack.c.l.b16 %v298
    %v646 = vunpack.c.h.b16 %v298
    %v647 = vunpack.c.l.b16 %v299
    %v648 = vunpack.c.h.b16 %v299
    %v649 = vunpack.c.l.b16 %v300
    %v650 = vunpack.c.h.b16 %v300
    %v651 = vunpack.c.l.b16 %v301
    %v652 = vunpack.c.h.b16 %v301
    %v653 = vunpack.c.l.b16 %v302
    %v654 = vunpack.c.h.b16 %v302
    %v655 = vunpack.c.l.b16 %v303
    %v656 = vunpack.c.h.b16 %v303
    %v657 = vunpack.c.l.b16 %v304
    %v658 = vunpack.c.h.b16 %v304
    %v659 = vunpack.c.l.b16 %v305
    %v660 = vunpack.c.h.b16 %v305
    %v661 = vunpack.c.l.b16 %v306
    %v662 = vunpack.c.h.b16 %v306
    %v663 = vunpack.c.l.b16 %v307
    %v664 = vunpack.c.h.b16 %v307
    %v665 = vunpack.c.l.b16 %v308
    %v666 = vunpack.c.h.b16 %v308
    %v667 = vunpack.c.l.b16 %v309
    %v668 = vunpack.c.h.b16 %v309
    %v669 = vunpack.c.l.b16 %v310
    %v670 = vunpack.c.h.b16 %v310
    %v671 = vunpack.c.l.b16 %v311
    %v672 = vunpack.c.h.b16 %v311
    %v673 = vunpack.c.l.b16 %v312
    %v674 = vunpack.c.h.b16 %v312
    %v675 = vunpack.c.l.b16 %v313
    %v676 = vunpack.c.h.b16 %v313
    %v677 = vunpack.c.l.b16 %v314
    %v678 = vunpack.c.h.b16 %v314
    %v679 = vunpack.c.l.b16 %v315
    %v680 = vunpack.c.h.b16 %v315
    %v681 = vunpack.c.l.b16 %v316
    %v682 = vunpack.c.h.b16 %v316
    %v683 = vunpack.c.l.b16 %v317
    %v684 = vunpack.c.h.b16 %v317
    %v685 = vunpack.c.l.b16 %v318
    %v686 = vunpack.c.h.b16 %v318
    %v687 = vunpack.c.l.b16 %v319
    %v688 = vunpack.c.h.b16 %v319
    %v689 = vunpack.c.l.b16 %v320
    %v690 = vunpack.c.h.b16 %v320
    %v691 = vunpack.c.l.b16 %v321
    %v692 = vunpack.c.h.b16 %v321
    %v693 = vunpack.c.l.b16 %v322
    %v694 = vunpack.c.h.b16 %v322
    %v695 = vunpack.c.l.b16 %v323
    %v696 = vunpack.c.h.b16 %v323
    %v697 = vunpack.c.l.b16 %v324
    %v698 = vunpack.c.h.b16 %v324
    %v699 = vunpack.c.l.b16 %v325
    %v700 = vunpack.c.h.b16 %v325
    %v701 = vunpack.c.l.b16 %v326
    %v702 = vunpack.c.h.b16 %v326
    %v703 = vunpack.c.l.b16 %v327
    %v704 = vunpack.c.h.b16 %v327
    %v705 = vunpack.c.l.b16 %v328
    %v706 = vunpack.c.h.b16 %v328
    %v707 = vunpack.c.l.b16 %v329
    %v708 = vunpack.c.h.b16 %v329
    %v709 = vunpack.c.l.b16 %v330
    %v710 = vunpack.c.h.b16 %v330
    %v711 = vunpack.c.l.b16 %v331
    %v712 = vunpack.c.h.b16 %v331
    %v713 = vunpack.c.l.b16 %v332
    %v714 = vunpack.c.h.b16 %v332
    %v715 = vunpack.c.l.b16 %v333
    %v716 = vunpack.c.h.b16 %v333
    %v717 = vunpack.c.l.b16 %v334
    %v718 = vunpack.c.h.b16 %v334
    %v719 = vpack.c.b16 %v471, %v463
    %v720 = vpack.c.b16 %v472, %v464
    %v721 = vpack.c.b16 %v473, %v465
    %v722 = vpack.c.b16 %v474, %v466
    %v723 = vpack.c.b16 %v475, %v467
    %v724 = vpack.c.b16 %v476, %v468
    %v725 = vpack.c.b16 %v477, %v469
    %v726 = vpack.c.b16 %v478, %v470
    %v727 = vpack.c.b16 %v487, %v479
    %v728 = vpack.c.b16 %v488, %v480
    %v729 = vpack.c.b16 %v489, %v481
    %v730 = vpack.c.b16 %v490, %v482
    %v731 = vpack.c.b16 %v491, %v483
    %v732 = vpack.c.b16 %v492, %v484
    %v733 = vpack.c.b16 %v493, %v485
    %v734 = vpack.c.b16 %v494, %v486
    %v735 = vpack.c.b16 %v503, %v495
    %v736 = vpack.c.b16 %v504, %v496
    %v737 = vpack.c.b16 %v505, %v497
    %v738 = vpack.c.b16 %v506, %v498
    %v739 = vpack.c.b16 %v507, %v499
    %v740 = vpack.c.b16 %v508, %v500
    %v741 = vpack.c.b16 %v509, %v501
    %v742 = vpack.c.b16 %v510, %v502
    %v743 = vpack.c.b16 %v519, %v511
    %v744 = vpack.c.b16 %v520, %v512
    %v745 = vpack.c.b16 %v521, %v513
    %v746 = vpack.c.b16 %v522, %v514
    %v747 = vpack.c.b16 %v523, %v515
    %v748 = vpack.c.b16 %v524, %v516
    %v749 = vpack.c.b16 %v525, %v517
    %v750 = vpack.c.b16 %v526, %v518
    %v751 = vpack.c.b16 %v535, %v527
    %v752 = vpack.c.b16 %v536, %v528
    %v753 = vpack.c.b16 %v537, %v529
    %v754 = vpack.c.b16 %v538, %v530
    %v755 = vpack.c.b16 %v539, %v531
    %v756 = vpack.c.b16 %v540, %v532
    %v757 = vpack.c.b16 %v541, %v533
    %v758 = vpack.c.b16 %v542, %v534
    %v759 = vpack.c.b16 %v551, %v543
    %v760 = vpack.c.b16 %v552, %v544
    %v761 = vpack.c.b16 %v553, %v545
    %v762 = vpack.c.b16 %v554, %v546
    %v763 = vpack.c.b16 %v555, %v547
    %v764 = vpack.c.b16 %v556, %v548
    %v765 = vpack.c.b16 %v557, %v549
    %v766 = vpack.c.b16 %v558, %v550
    %v767 = vpack.c.b16 %v567, %v559
    %v768 = vpack.c.b16 %v568, %v560
    %v769 = vpack.c.b16 %v569, %v561
    %v770 = vpack.c.b16 %v570, %v562
    %v771 = vpack.c.b16 %v571, %v563
    %v772 = vpack.c.b16 %v572, %v564
    %v773 = vpack.c.b16 %v573, %v565
    %v774 = vpack.c.b16 %v574, %v566
    %v775 = vpack.c.b16 %v583, %v575
    %v776 = vpack.c.b16 %v584, %v576
    %v777 = vpack.c.b16 %v585, %v577
    %v778 = vpack.c.b16 %v586, %v578
    %v779 = vpack.c.b16 %v587, %v579
    %v780 = vpack.c.b16 %v588, %v580
    %v781 = vpack.c.b16 %v589, %v581
    %v782 = vpack.c.b16 %v590, %v582
    %v783 = vpack.c.b16 %v599, %v591
    %v784 = vpack.c.b16 %v600, %v592
    %v785 = vpack.c.b16 %v601, %v593
    %v786 = vpack.c.b16 %v602, %v594
    %v787 = vpack.c.b16 %v603, %v595
    %v788 = vpack.c.b16 %v604, %v596
    %v789 = vpack.c.b16 %v605, %v597
    %v790 = vpack.c.b16 %v606, %v598
    %v791 = vpack.c.b16 %v615, %v607
    %v792 = vpack.c.b16 %v616, %v608
    %v793 = vpack.c.b16 %v617, %v609
    %v794 = vpack.c.b16 %v618, %v610
    %v795 = vpack.c.b16 %v619, %v611
    %v796 = vpack.c.b16 %v620, %v612
    %v797 = vpack.c.b16 %v621, %v613
    %v798 = vpack.c.b16 %v622, %v614
    %v799 = vpack.c.b16 %v631, %v623
    %v800 = vpack.c.b16 %v632, %v624
    %v801 = vpack.c.b16 %v633, %v625
    %v802 = vpack.c.b16 %v634, %v626
    %v803 = vpack.c.b16 %v635, %v627
    %v804 = vpack.c.b16 %v636, %v628
    %v805 = vpack.c.b16 %v637, %v629
    %v806 = vpack.c.b16 %v638, %v630
    %v807 = vpack.c.b16 %v647, %v639
    %v808 = vpack.c.b16 %v648, %v640
    %v809 = vpack.c.b16 %v649, %v641
    %v810 = vpack.c.b16 %v650, %v642
    %v811 = vpack.c.b16 %v651, %v643
    %v812 = vpack.c.b16 %v652, %v644
    %v813 = vpack.c.b16 %v653, %v645
    %v814 = vpack.c.b16 %v654, %v646
    %v815 = vpack.c.b16 %v663, %v655
    %v816 = vpack.c.b16 %v664, %v656
    %v817 = vpack.c.b16 %v665, %v657
    %v818 = vpack.c.b16 %v666, %v658
    %v819 = vpack.c.b16 %v667, %v659
    %v820 = vpack.c.b16 %v668, %v660
    %v821 = vpack.c.b16 %v669, %v661
    %v822 = vpack.c.b16 %v670, %v662
    %v823 = vpack.c.b16 %v679, %v671
    %v824 = vpack.c.b16 %v680, %v672
    %v825 = vpack.c.b16 %v681, %v673
    %v826 = vpack.c.b16 %v682, %v674
    %v827 = vpack.c.b16 %v683, %v675
    %v828 = vpack.c.b16 %v684, %v676
    %v829 = vpack.c.b16 %v685, %v677
    %v830 = vpack.c.b16 %v686, %v678
    %v831 = vpack.c.b16 %v695, %v687
    %v832 = vpack.c.b16 %v696, %v688
    %v833 = vpack.c.b16 %v697, %v689
    %v834 = vpack.c.b16 %v698, %v690
    %v835 = vpack.c.b16 %v699, %v691
    %v836 = vpack.c.b16 %v700, %v692
    %v837 = vpack.c.b16 %v701, %v693
    %v838 = vpack.c.b16 %v702, %v694
    %v839 = vpack.c.b16 %v711, %v703
    %v840 = vpack.c.b16 %v712, %v704
    %v841 = vpack.c.b16 %v713, %v705
    %v842 = vpack.c.b16 %v714, %v706
    %v843 = vpack.c.b16 %v715, %v707
    %v844 = vpack.c.b16 %v716, %v708
    %v845 = vpack.c.b16 %v717, %v709
    %v846 = vpack.c.b16 %v718, %v710
    %975 = vmatpush.bf16.msra.mxu0 %v775
    %976 = vmatpush.bf16.msra.mxu0 %v767
    %977 = vmatpush.bf16.msra.mxu0 %v759
    %978 = vmatpush.bf16.msra.mxu0 %v751
    %979 = vmatpush.bf16.msra.mxu0 %v743
    %980 = vmatpush.bf16.msra.mxu0 %v735
    %981 = vmatpush.bf16.msra.mxu0 %v727
    %982 = vmatpush.bf16.msra.mxu0 %v719
    %983 = vmatmul.bf16.gmra.mxu0 %v205
    %v984 = vpop.f32.mrf.mxu0
    %v985 = vadd.f32 0.0, %v984
    %v986 = vpop.f32.mrf.mxu0
    %987 = vdwg.mxu0
    %988 = vmatpush.bf16.msra.mxu0 %v839
    %989 = vmatpush.bf16.msra.mxu0 %v831
    %990 = vmatpush.bf16.msra.mxu0 %v823
    %991 = vmatpush.bf16.msra.mxu0 %v815
    %992 = vmatpush.bf16.msra.mxu0 %v807
    %993 = vmatpush.bf16.msra.mxu0 %v799
    %994 = vmatpush.bf16.msra.mxu0 %v791
    %995 = vmatpush.bf16.msra.mxu0 %v783
    %996 = vmatmul.bf16.gmra.mxu0 %v206
    %v997 = vpop.f32.mrf.mxu0
    %v998 = vadd.f32 %v985, %v997
    %v999 = vpop.f32.mrf.mxu0
    %1000 = vdwg.mxu0
    %1001 = vmatpush.bf16.msra.mxu0 %v776
    %1002 = vmatpush.bf16.msra.mxu0 %v768
    %1003 = vmatpush.bf16.msra.mxu0 %v760
    %1004 = vmatpush.bf16.msra.mxu0 %v752
    %1005 = vmatpush.bf16.msra.mxu0 %v744
    %1006 = vmatpush.bf16.msra.mxu0 %v736
    %1007 = vmatpush.bf16.msra.mxu0 %v728
    %1008 = vmatpush.bf16.msra.mxu0 %v720
    %1009 = vmatmul.bf16.gmra.mxu0 %v205
    %v1010 = vpop.f32.mrf.mxu0
    %v1011 = vadd.f32 0.0, %v1010
    %v1012 = vpop.f32.mrf.mxu0
    %1013 = vdwg.mxu0
    %1014 = vmatpush.bf16.msra.mxu0 %v840
    %1015 = vmatpush.bf16.msra.mxu0 %v832
    %1016 = vmatpush.bf16.msra.mxu0 %v824
    %1017 = vmatpush.bf16.msra.mxu0 %v816
    %1018 = vmatpush.bf16.msra.mxu0 %v808
    %1019 = vmatpush.bf16.msra.mxu0 %v800
    %1020 = vmatpush.bf16.msra.mxu0 %v792
    %1021 = vmatpush.bf16.msra.mxu0 %v784
    %1022 = vmatmul.bf16.gmra.mxu0 %v206
    %v1023 = vpop.f32.mrf.mxu0
    %v1024 = vadd.f32 %v1011, %v1023
    %v1025 = vpop.f32.mrf.mxu0
    %1026 = vdwg.mxu0
    %1027 = vmatpush.bf16.msra.mxu0 %v777
    %1028 = vmatpush.bf16.msra.mxu0 %v769
    %1029 = vmatpush.bf16.msra.mxu0 %v761
    %1030 = vmatpush.bf16.msra.mxu0 %v753
    %1031 = vmatpush.bf16.msra.mxu0 %v745
    %1032 = vmatpush.bf16.msra.mxu0 %v737
    %1033 = vmatpush.bf16.msra.mxu0 %v729
    %1034 = vmatpush.bf16.msra.mxu0 %v721
    %1035 = vmatmul.bf16.gmra.mxu0 %v205
    %v1036 = vpop.f32.mrf.mxu0
    %v1037 = vadd.f32 0.0, %v1036
    %v1038 = vpop.f32.mrf.mxu0
    %1039 = vdwg.mxu0
    %1040 = vmatpush.bf16.msra.mxu0 %v841
    %1041 = vmatpush.bf16.msra.mxu0 %v833
    %1042 = vmatpush.bf16.msra.mxu0 %v825
    %1043 = vmatpush.bf16.msra.mxu0 %v817
    %1044 = vmatpush.bf16.msra.mxu0 %v809
    %1045 = vmatpush.bf16.msra.mxu0 %v801
    %1046 = vmatpush.bf16.msra.mxu0 %v793
    %1047 = vmatpush.bf16.msra.mxu0 %v785
    %1048 = vmatmul.bf16.gmra.mxu0 %v206
    %v1049 = vpop.f32.mrf.mxu0
    %v1050 = vadd.f32 %v1037, %v1049
    %v1051 = vpop.f32.mrf.mxu0
    %1052 = vdwg.mxu0
    %1053 = vmatpush.bf16.msra.mxu0 %v778
    %1054 = vmatpush.bf16.msra.mxu0 %v770
    %1055 = vmatpush.bf16.msra.mxu0 %v762
    %1056 = vmatpush.bf16.msra.mxu0 %v754
    %1057 = vmatpush.bf16.msra.mxu0 %v746
    %1058 = vmatpush.bf16.msra.mxu0 %v738
    %1059 = vmatpush.bf16.msra.mxu0 %v730
    %1060 = vmatpush.bf16.msra.mxu0 %v722
    %1061 = vmatmul.bf16.gmra.mxu0 %v205
    %v1062 = vpop.f32.mrf.mxu0
    %v1063 = vadd.f32 0.0, %v1062
    %v1064 = vpop.f32.mrf.mxu0
    %1065 = vdwg.mxu0
    %1066 = vmatpush.bf16.msra.mxu0 %v842
    %1067 = vmatpush.bf16.msra.mxu0 %v834
    %1068 = vmatpush.bf16.msra.mxu0 %v826
    %1069 = vmatpush.bf16.msra.mxu0 %v818
    %1070 = vmatpush.bf16.msra.mxu0 %v810
    %1071 = vmatpush.bf16.msra.mxu0 %v802
    %1072 = vmatpush.bf16.msra.mxu0 %v794
    %1073 = vmatpush.bf16.msra.mxu0 %v786
    %1074 = vmatmul.bf16.gmra.mxu0 %v206
    %v1075 = vpop.f32.mrf.mxu0
    %v1076 = vadd.f32 %v1063, %v1075
    %v1077 = vpop.f32.mrf.mxu0
    %1078 = vdwg.mxu0
    %1079 = vmatpush.bf16.msra.mxu0 %v779
    %1080 = vmatpush.bf16.msra.mxu0 %v771
    %1081 = vmatpush.bf16.msra.mxu0 %v763
    %1082 = vmatpush.bf16.msra.mxu0 %v755
    %1083 = vmatpush.bf16.msra.mxu0 %v747
    %1084 = vmatpush.bf16.msra.mxu0 %v739
    %1085 = vmatpush.bf16.msra.mxu0 %v731
    %1086 = vmatpush.bf16.msra.mxu0 %v723
    %1087 = vmatmul.bf16.gmra.mxu0 %v205
    %v1088 = vpop.f32.mrf.mxu0
    %v1089 = vadd.f32 0.0, %v1088
    %v1090 = vpop.f32.mrf.mxu0
    %1091 = vdwg.mxu0
    %1092 = vmatpush.bf16.msra.mxu0 %v843
    %1093 = vmatpush.bf16.msra.mxu0 %v835
    %1094 = vmatpush.bf16.msra.mxu0 %v827
    %1095 = vmatpush.bf16.msra.mxu0 %v819
    %1096 = vmatpush.bf16.msra.mxu0 %v811
    %1097 = vmatpush.bf16.msra.mxu0 %v803
    %1098 = vmatpush.bf16.msra.mxu0 %v795
    %1099 = vmatpush.bf16.msra.mxu0 %v787
    %1100 = vmatmul.bf16.gmra.mxu0 %v206
    %v1101 = vpop.f32.mrf.mxu0
    %v1102 = vadd.f32 %v1089, %v1101
    %v1103 = vpop.f32.mrf.mxu0
    %1104 = vdwg.mxu0
    %1105 = vmatpush.bf16.msra.mxu0 %v780
    %1106 = vmatpush.bf16.msra.mxu0 %v772
    %1107 = vmatpush.bf16.msra.mxu0 %v764
    %1108 = vmatpush.bf16.msra.mxu0 %v756
    %1109 = vmatpush.bf16.msra.mxu0 %v748
    %1110 = vmatpush.bf16.msra.mxu0 %v740
    %1111 = vmatpush.bf16.msra.mxu0 %v732
    %1112 = vmatpush.bf16.msra.mxu0 %v724
    %1113 = vmatmul.bf16.gmra.mxu0 %v205
    %v1114 = vpop.f32.mrf.mxu0
    %v1115 = vadd.f32 0.0, %v1114
    %v1116 = vpop.f32.mrf.mxu0
    %1117 = vdwg.mxu0
    %1118 = vmatpush.bf16.msra.mxu0 %v844
    %1119 = vmatpush.bf16.msra.mxu0 %v836
    %1120 = vmatpush.bf16.msra.mxu0 %v828
    %1121 = vmatpush.bf16.msra.mxu0 %v820
    %1122 = vmatpush.bf16.msra.mxu0 %v812
    %1123 = vmatpush.bf16.msra.mxu0 %v804
    %1124 = vmatpush.bf16.msra.mxu0 %v796
    %1125 = vmatpush.bf16.msra.mxu0 %v788
    %1126 = vmatmul.bf16.gmra.mxu0 %v206
    %v1127 = vpop.f32.mrf.mxu0
    %v1128 = vadd.f32 %v1115, %v1127
    %v1129 = vpop.f32.mrf.mxu0
    %1130 = vdwg.mxu0
    %1131 = vmatpush.bf16.msra.mxu0 %v781
    %1132 = vmatpush.bf16.msra.mxu0 %v773
    %1133 = vmatpush.bf16.msra.mxu0 %v765
    %1134 = vmatpush.bf16.msra.mxu0 %v757
    %1135 = vmatpush.bf16.msra.mxu0 %v749
    %1136 = vmatpush.bf16.msra.mxu0 %v741
    %1137 = vmatpush.bf16.msra.mxu0 %v733
    %1138 = vmatpush.bf16.msra.mxu0 %v725
    %1139 = vmatmul.bf16.gmra.mxu0 %v205
    %v1140 = vpop.f32.mrf.mxu0
    %v1141 = vadd.f32 0.0, %v1140
    %v1142 = vpop.f32.mrf.mxu0
    %1143 = vdwg.mxu0
    %1144 = vmatpush.bf16.msra.mxu0 %v845
    %1145 = vmatpush.bf16.msra.mxu0 %v837
    %1146 = vmatpush.bf16.msra.mxu0 %v829
    %1147 = vmatpush.bf16.msra.mxu0 %v821
    %1148 = vmatpush.bf16.msra.mxu0 %v813
    %1149 = vmatpush.bf16.msra.mxu0 %v805
    %1150 = vmatpush.bf16.msra.mxu0 %v797
    %1151 = vmatpush.bf16.msra.mxu0 %v789
    %1152 = vmatmul.bf16.gmra.mxu0 %v206
    %v1153 = vpop.f32.mrf.mxu0
    %v1154 = vadd.f32 %v1141, %v1153
    %v1155 = vpop.f32.mrf.mxu0
    %1156 = vdwg.mxu0
    %1157 = vmatpush.bf16.msra.mxu0 %v782
    %1158 = vmatpush.bf16.msra.mxu0 %v774
    %1159 = vmatpush.bf16.msra.mxu0 %v766
    %1160 = vmatpush.bf16.msra.mxu0 %v758
    %1161 = vmatpush.bf16.msra.mxu0 %v750
    %1162 = vmatpush.bf16.msra.mxu0 %v742
    %1163 = vmatpush.bf16.msra.mxu0 %v734
    %1164 = vmatpush.bf16.msra.mxu0 %v726
    %1165 = vmatmul.bf16.gmra.mxu0 %v205
    %v1166 = vpop.f32.mrf.mxu0
    %v1167 = vadd.f32 0.0, %v1166
    %v1168 = vpop.f32.mrf.mxu0
    %1169 = vdwg.mxu0
    %1170 = vmatpush.bf16.msra.mxu0 %v846
    %1171 = vmatpush.bf16.msra.mxu0 %v838
    %1172 = vmatpush.bf16.msra.mxu0 %v830
    %1173 = vmatpush.bf16.msra.mxu0 %v822
    %1174 = vmatpush.bf16.msra.mxu0 %v814
    %1175 = vmatpush.bf16.msra.mxu0 %v806
    %1176 = vmatpush.bf16.msra.mxu0 %v798
    %1177 = vmatpush.bf16.msra.mxu0 %v790
    %1178 = vmatmul.bf16.gmra.mxu0 %v206
    %v1179 = vpop.f32.mrf.mxu0
    %v1180 = vadd.f32 %v1167, %v1179
    %v1181 = vpop.f32.mrf.mxu0
    %1182 = vdwg.mxu0
    %v1183 = vmax.f32 %v998, %v1050
    %v1184 = vmax.f32 %v1024, %v1076
    %v1185 = vmax.f32 %v1102, %v1154
    %v1186 = vmax.f32 %v1128, %v1180
    %v1187 = vmax.f32 %v1183, %v1185
    %v1188 = vmax.f32 %v1184, %v1186
    %v1189 = vld [vmem:[#allocation4] sm:$0x3]
    %v1191 = vperm.slane %v1189, 0
    %v1192 = vperm.slane %v1189, 1
    %v1195 = vadd.f32 %v1187, %v1191
    %v1196 = vadd.f32 %v1188, %v1192
    %v1197 = vmul.f32 %v1195, 0.5
    %v1198 = vmul.f32 %v1196, 0.5
    %v1199 = vtanh.pop %v1197
    %v1200 = vtanh.pop %v1198
    %v1201 = vmul.f32 %v1199, 0.5
    %v1202 = vmul.f32 %v1200, 0.5
    %v1203 = vadd.f32 %v1201, 0.5
    %v1204 = vadd.f32 %v1202, 0.5
    %v1205 = vpack.c.bf16 %v1203, %v1203
    %v1206 = vpack.c.bf16 %v1204, %v1204
    %v1207 = vld [vmem:[#allocation6] sm:$0xf]
    %v1208 = vld [vmem:[#allocation6 + $0x4] sm:$0xf]
    %v1209 = vld [vmem:[#allocation6 + $0x8] sm:$0xf]
    %v1210 = vld [vmem:[#allocation6 + $0xc] sm:$0xf]
    %v1211 = vld [vmem:[#allocation6 + $0x10] sm:$0xf]
    %v1212 = vld [vmem:[#allocation6 + $0x14] sm:$0xf]
    %v1213 = vld [vmem:[#allocation6 + $0x18] sm:$0xf]
    %v1214 = vld [vmem:[#allocation6 + $0x1c] sm:$0xf]
    %v1215 = vld [vmem:[#allocation6 + $0x20] sm:$0xf]
    %v1216 = vld [vmem:[#allocation6 + $0x24] sm:$0xf]
    %v1217 = vld [vmem:[#allocation6 + $0x28] sm:$0xf]
    %v1218 = vld [vmem:[#allocation6 + $0x2c] sm:$0xf]
    %v1219 = vld [vmem:[#allocation6 + $0x30] sm:$0xf]
    %v1220 = vld [vmem:[#allocation6 + $0x34] sm:$0xf]
    %v1221 = vld [vmem:[#allocation6 + $0x38] sm:$0xf]
    %v1222 = vld [vmem:[#allocation6 + $0x3c] sm:$0xf]
    %v1223 = vld [vmem:[#allocation6 + $0x40] sm:$0xf]
    %v1224 = vld [vmem:[#allocation6 + $0x44] sm:$0xf]
    %v1225 = vld [vmem:[#allocation6 + $0x48] sm:$0xf]
    %v1226 = vld [vmem:[#allocation6 + $0x4c] sm:$0xf]
    %v1227 = vld [vmem:[#allocation6 + $0x50] sm:$0xf]
    %v1228 = vld [vmem:[#allocation6 + $0x54] sm:$0xf]
    %v1229 = vld [vmem:[#allocation6 + $0x58] sm:$0xf]
    %v1230 = vld [vmem:[#allocation6 + $0x5c] sm:$0xf]
    %v1231 = vld [vmem:[#allocation6 + $0x60] sm:$0xf]
    %v1232 = vld [vmem:[#allocation6 + $0x64] sm:$0xf]
    %v1233 = vld [vmem:[#allocation6 + $0x68] sm:$0xf]
    %v1234 = vld [vmem:[#allocation6 + $0x6c] sm:$0xf]
    %v1235 = vld [vmem:[#allocation6 + $0x70] sm:$0xf]
    %v1236 = vld [vmem:[#allocation6 + $0x74] sm:$0xf]
    %v1237 = vld [vmem:[#allocation6 + $0x78] sm:$0xf]
    %v1238 = vld [vmem:[#allocation6 + $0x7c] sm:$0xf]
    %v1239 = vld [vmem:[#allocation7] sm:$0x1]
    %v1241 = vperm.slane %v1239, 0
    %v1275 = vunpack.c.l.b16 %v1207
    %v1276 = vunpack.c.l.b16 %v1208
    %v1277 = vunpack.c.l.b16 %v1209
    %v1278 = vunpack.c.l.b16 %v1210
    %v1279 = vunpack.c.l.b16 %v1211
    %v1280 = vunpack.c.l.b16 %v1212
    %v1281 = vunpack.c.l.b16 %v1213
    %v1282 = vunpack.c.l.b16 %v1214
    %v1283 = vunpack.c.l.b16 %v1215
    %v1284 = vunpack.c.l.b16 %v1216
    %v1285 = vunpack.c.l.b16 %v1217
    %v1286 = vunpack.c.l.b16 %v1218
    %v1287 = vunpack.c.l.b16 %v1219
    %v1288 = vunpack.c.l.b16 %v1220
    %v1289 = vunpack.c.l.b16 %v1221
    %v1290 = vunpack.c.l.b16 %v1222
    %v1291 = vunpack.c.l.b16 %v1223
    %v1292 = vunpack.c.l.b16 %v1224
    %v1293 = vunpack.c.l.b16 %v1225
    %v1294 = vunpack.c.l.b16 %v1226
    %v1295 = vunpack.c.l.b16 %v1227
    %v1296 = vunpack.c.l.b16 %v1228
    %v1297 = vunpack.c.l.b16 %v1229
    %v1298 = vunpack.c.l.b16 %v1230
    %v1299 = vunpack.c.l.b16 %v1231
    %v1300 = vunpack.c.l.b16 %v1232
    %v1301 = vunpack.c.l.b16 %v1233
    %v1302 = vunpack.c.l.b16 %v1234
    %v1303 = vunpack.c.l.b16 %v1235
    %v1304 = vunpack.c.l.b16 %v1236
    %v1305 = vunpack.c.l.b16 %v1237
    %v1306 = vunpack.c.l.b16 %v1238
    %v1307 = vpack.c.b16 %v1276, %v1275
    %v1308 = vpack.c.b16 %v1278, %v1277
    %v1309 = vpack.c.b16 %v1280, %v1279
    %v1310 = vpack.c.b16 %v1282, %v1281
    %v1311 = vpack.c.b16 %v1284, %v1283
    %v1312 = vpack.c.b16 %v1286, %v1285
    %v1313 = vpack.c.b16 %v1288, %v1287
    %v1314 = vpack.c.b16 %v1290, %v1289
    %v1315 = vpack.c.b16 %v1292, %v1291
    %v1316 = vpack.c.b16 %v1294, %v1293
    %v1317 = vpack.c.b16 %v1296, %v1295
    %v1318 = vpack.c.b16 %v1298, %v1297
    %v1319 = vpack.c.b16 %v1300, %v1299
    %v1320 = vpack.c.b16 %v1302, %v1301
    %v1321 = vpack.c.b16 %v1304, %v1303
    %v1322 = vpack.c.b16 %v1306, %v1305
    %1339 = vmatpush.bf16.msra.mxu0 %v1314
    %1340 = vmatpush.bf16.msra.mxu0 %v1313
    %1341 = vmatpush.bf16.msra.mxu0 %v1312
    %1342 = vmatpush.bf16.msra.mxu0 %v1311
    %1343 = vmatpush.bf16.msra.mxu0 %v1310
    %1344 = vmatpush.bf16.msra.mxu0 %v1309
    %1345 = vmatpush.bf16.msra.mxu0 %v1308
    %1346 = vmatpush.bf16.msra.mxu0 %v1307
    %1347 = vmatmul.bf16.gmra.mxu0 %v1205
    %v1348 = vpop.f32.mrf.mxu0
    %v1349 = vadd.f32 %v1241, %v1348
    %v1350 = vpop.f32.mrf.mxu0
    %1351 = vdwg.mxu0
    %1352 = vmatpush.bf16.msra.mxu0 %v1322
    %1353 = vmatpush.bf16.msra.mxu0 %v1321
    %1354 = vmatpush.bf16.msra.mxu0 %v1320
    %1355 = vmatpush.bf16.msra.mxu0 %v1319
    %1356 = vmatpush.bf16.msra.mxu0 %v1318
    %1357 = vmatpush.bf16.msra.mxu0 %v1317
    %1358 = vmatpush.bf16.msra.mxu0 %v1316
    %1359 = vmatpush.bf16.msra.mxu0 %v1315
    %1360 = vmatmul.bf16.gmra.mxu0 %v1206
    %v1361 = vpop.f32.mrf.mxu0
    %v1362 = vadd.f32 %v1349, %v1361
    %v1363 = vpop.f32.mrf.mxu0
    %1364 = vdwg.mxu0
    %v1365 = vmul.f32 %v1362, 0.5
    %v1366 = vtanh.pop %v1365
    %v1367 = vmul.f32 %v1366, 0.5
    %v1368 = vadd.f32 %v1367, 0.5
    %v1369 = vpack.c.bf16 %v1368, %v1368
    %v1370 = vld [vmem:[#allocation9] sm:$0xf]
    %v1371 = vld [vmem:[#allocation9 + $0x4] sm:$0xf]
    %v1372 = vld [vmem:[#allocation9 + $0x8] sm:$0xf]
    %v1373 = vld [vmem:[#allocation9 + $0xc] sm:$0xf]
    %v1374 = vld [vmem:[#allocation9 + $0x10] sm:$0xf]
    %v1375 = vld [vmem:[#allocation9 + $0x14] sm:$0xf]
    %v1376 = vld [vmem:[#allocation9 + $0x18] sm:$0xf]
    %v1377 = vld [vmem:[#allocation9 + $0x1c] sm:$0xf]
    %v1378 = vld [vmem:[#allocation9 + $0x20] sm:$0xf]
    %v1379 = vld [vmem:[#allocation9 + $0x24] sm:$0xf]
    %v1380 = vld [vmem:[#allocation9 + $0x28] sm:$0xf]
    %v1381 = vld [vmem:[#allocation9 + $0x2c] sm:$0xf]
    %v1382 = vld [vmem:[#allocation9 + $0x30] sm:$0xf]
    %v1383 = vld [vmem:[#allocation9 + $0x34] sm:$0xf]
    %v1384 = vld [vmem:[#allocation9 + $0x38] sm:$0xf]
    %v1385 = vld [vmem:[#allocation9 + $0x3c] sm:$0xf]
    %v1386 = vld [vmem:[#allocation10] sm:$0x1]
    %v1388 = vperm.slane %v1386, 0
    %v1406 = vunpack.c.l.b16 %v1370
    %v1407 = vunpack.c.l.b16 %v1371
    %v1408 = vunpack.c.l.b16 %v1372
    %v1409 = vunpack.c.l.b16 %v1373
    %v1410 = vunpack.c.l.b16 %v1374
    %v1411 = vunpack.c.l.b16 %v1375
    %v1412 = vunpack.c.l.b16 %v1376
    %v1413 = vunpack.c.l.b16 %v1377
    %v1414 = vunpack.c.l.b16 %v1378
    %v1415 = vunpack.c.l.b16 %v1379
    %v1416 = vunpack.c.l.b16 %v1380
    %v1417 = vunpack.c.l.b16 %v1381
    %v1418 = vunpack.c.l.b16 %v1382
    %v1419 = vunpack.c.l.b16 %v1383
    %v1420 = vunpack.c.l.b16 %v1384
    %v1421 = vunpack.c.l.b16 %v1385
    %v1422 = vpack.c.b16 %v1407, %v1406
    %v1423 = vpack.c.b16 %v1409, %v1408
    %v1424 = vpack.c.b16 %v1411, %v1410
    %v1425 = vpack.c.b16 %v1413, %v1412
    %v1426 = vpack.c.b16 %v1415, %v1414
    %v1427 = vpack.c.b16 %v1417, %v1416
    %v1428 = vpack.c.b16 %v1419, %v1418
    %v1429 = vpack.c.b16 %v1421, %v1420
    %1438 = vmatpush.bf16.msra.mxu0 %v1429
    %1439 = vmatpush.bf16.msra.mxu0 %v1428
    %1440 = vmatpush.bf16.msra.mxu0 %v1427
    %1441 = vmatpush.bf16.msra.mxu0 %v1426
    %1442 = vmatpush.bf16.msra.mxu0 %v1425
    %1443 = vmatpush.bf16.msra.mxu0 %v1424
    %1444 = vmatpush.bf16.msra.mxu0 %v1423
    %1445 = vmatpush.bf16.msra.mxu0 %v1422
    %1446 = vmatmul.bf16.gmra.mxu0 %v1369
    %v1447 = vpop.f32.mrf.mxu0
    %v1448 = vadd.f32 %v1388, %v1447
    %v1449 = vpop.f32.mrf.mxu0
    %1450 = vdwg.mxu0
    %v1451 = vmul.f32 %v1448, 0.5
    %v1452 = vtanh.pop %v1451
    %v1453 = vmul.f32 %v1452, 0.5
    %v1454 = vadd.f32 %v1453, 0.5
    %v1455 = vpack.c.bf16 %v1454, %v1454
    %v1456 = vld [vmem:[%s7] sm:$0xf]
    %v1457 = vld [vmem:[%s7 + $0x4] sm:$0xf]
    %v1458 = vld [vmem:[%s7 + $0x8] sm:$0xf]
    %v1459 = vld [vmem:[%s7 + $0xc] sm:$0xf]
    %v1460 = vld [vmem:[%s7 + $0x10] sm:$0xf]
    %v1461 = vld [vmem:[%s7 + $0x14] sm:$0xf]
    %v1462 = vld [vmem:[%s7 + $0x18] sm:$0xf]
    %v1463 = vld [vmem:[%s7 + $0x1c] sm:$0xf]
    %v1464 = vld [vmem:[%s7 + $0x20] sm:$0xf]
    %v1465 = vld [vmem:[%s7 + $0x24] sm:$0xf]
    %v1466 = vld [vmem:[%s7 + $0x28] sm:$0xf]
    %v1467 = vld [vmem:[%s7 + $0x2c] sm:$0xf]
    %v1468 = vld [vmem:[%s7 + $0x30] sm:$0xf]
    %v1469 = vld [vmem:[%s7 + $0x34] sm:$0xf]
    %v1470 = vld [vmem:[%s7 + $0x38] sm:$0xf]
    %v1471 = vld [vmem:[%s7 + $0x3c] sm:$0xf]
    %v1472 = vld [vmem:[#allocation12] sm:$0x1]
    %v1474 = vperm.slane %v1472, 0
    %v1492 = vunpack.c.l.b16 %v1456
    %v1493 = vunpack.c.l.b16 %v1457
    %v1494 = vunpack.c.l.b16 %v1458
    %v1495 = vunpack.c.l.b16 %v1459
    %v1496 = vunpack.c.l.b16 %v1460
    %v1497 = vunpack.c.l.b16 %v1461
    %v1498 = vunpack.c.l.b16 %v1462
    %v1499 = vunpack.c.l.b16 %v1463
    %v1500 = vunpack.c.l.b16 %v1464
    %v1501 = vunpack.c.l.b16 %v1465
    %v1502 = vunpack.c.l.b16 %v1466
    %v1503 = vunpack.c.l.b16 %v1467
    %v1504 = vunpack.c.l.b16 %v1468
    %v1505 = vunpack.c.l.b16 %v1469
    %v1506 = vunpack.c.l.b16 %v1470
    %v1507 = vunpack.c.l.b16 %v1471
    %v1508 = vpack.c.b16 %v1493, %v1492
    %v1509 = vpack.c.b16 %v1495, %v1494
    %v1510 = vpack.c.b16 %v1497, %v1496
    %v1511 = vpack.c.b16 %v1499, %v1498
    %v1512 = vpack.c.b16 %v1501, %v1500
    %v1513 = vpack.c.b16 %v1503, %v1502
    %v1514 = vpack.c.b16 %v1505, %v1504
    %v1515 = vpack.c.b16 %v1507, %v1506
    %1524 = vmatpush.bf16.msra.mxu0 %v1515
    %1525 = vmatpush.bf16.msra.mxu0 %v1514
    %1526 = vmatpush.bf16.msra.mxu0 %v1513
    %1527 = vmatpush.bf16.msra.mxu0 %v1512
    %1528 = vmatpush.bf16.msra.mxu0 %v1511
    %1529 = vmatpush.bf16.msra.mxu0 %v1510
    %1530 = vmatpush.bf16.msra.mxu0 %v1509
    %1531 = vmatpush.bf16.msra.mxu0 %v1508
    %1532 = vmatmul.bf16.gmra.mxu0 %v1455
    %v1533 = vpop.f32.mrf.mxu0
    %v1534 = vadd.f32 %v1474, %v1533
    %v1535 = vpop.f32.mrf.mxu0
    %1536 = vdwg.mxu0
    %v1537 = vmul.f32 %v1534, 0.5
    %v1538 = vtanh.pop %v1537
    %v1539 = vmul.f32 %v1538, 0.5
    %v1540 = vadd.f32 %v1539, 0.5
    %v1541 = vpack.c.bf16 %v1540, %v1540
    %v1542 = vld [vmem:[#allocation13] sm:$0xff]
    %v1543 = vld [vmem:[#allocation13 + $0x8] sm:$0xff]
    %v1544 = vld [vmem:[#allocation13 + $0x10] sm:$0xf]
    %v1545 = vld [vmem:[#allocation13 + $0x14] sm:$0xff]
    %v1546 = vld [vmem:[#allocation13 + $0x1c] sm:$0xff]
    %v1547 = vld [vmem:[#allocation13 + $0x24] sm:$0xf]
    %v1548 = vld [vmem:[#allocation13 + $0x28] sm:$0xff]
    %v1549 = vld [vmem:[#allocation13 + $0x30] sm:$0xff]
    %v1550 = vld [vmem:[#allocation13 + $0x38] sm:$0xf]
    %v1551 = vld [vmem:[#allocation13 + $0x3c] sm:$0xff]
    %v1552 = vld [vmem:[#allocation13 + $0x44] sm:$0xff]
    %v1553 = vld [vmem:[#allocation13 + $0x4c] sm:$0xf]
    %v1554 = vld [vmem:[#allocation13 + $0x50] sm:$0xff]
    %v1555 = vld [vmem:[#allocation13 + $0x58] sm:$0xff]
    %v1556 = vld [vmem:[#allocation13 + $0x60] sm:$0xf]
    %v1557 = vld [vmem:[#allocation13 + $0x64] sm:$0xff]
    %v1558 = vld [vmem:[#allocation13 + $0x6c] sm:$0xff]
    %v1559 = vld [vmem:[#allocation13 + $0x74] sm:$0xf]
    %v1560 = vld [vmem:[#allocation13 + $0x78] sm:$0xff]
    %v1561 = vld [vmem:[#allocation13 + $0x80] sm:$0xff]
    %v1562 = vld [vmem:[#allocation13 + $0x88] sm:$0xf]
    %v1563 = vld [vmem:[#allocation13 + $0x8c] sm:$0xff]
    %v1564 = vld [vmem:[#allocation13 + $0x94] sm:$0xff]
    %v1565 = vld [vmem:[#allocation13 + $0x9c] sm:$0xf]
    %v1566 = vld [vmem:[#allocation13 + $0xa0] sm:$0xff]
    %v1567 = vld [vmem:[#allocation13 + $0xa8] sm:$0xff]
    %v1568 = vld [vmem:[#allocation13 + $0xb0] sm:$0xf]
    %v1569 = vld [vmem:[#allocation13 + $0xb4] sm:$0xff]
    %v1570 = vld [vmem:[#allocation13 + $0xbc] sm:$0xff]
    %v1571 = vld [vmem:[#allocation13 + $0xc4] sm:$0xf]
    %v1572 = vld [vmem:[#allocation13 + $0xc8] sm:$0xff]
    %v1573 = vld [vmem:[#allocation13 + $0xd0] sm:$0xff]
    %v1574 = vld [vmem:[#allocation13 + $0xd8] sm:$0xf]
    %v1575 = vld [vmem:[#allocation13 + $0xdc] sm:$0xff]
    %v1576 = vld [vmem:[#allocation13 + $0xe4] sm:$0xff]
    %v1577 = vld [vmem:[#allocation13 + $0xec] sm:$0xf]
    %v1578 = vld [vmem:[#allocation13 + $0xf0] sm:$0xff]
    %v1579 = vld [vmem:[#allocation13 + $0xf8] sm:$0xff]
    %v1580 = vld [vmem:[#allocation13 + $0x100] sm:$0xf]
    %v1581 = vld [vmem:[#allocation13 + $0x104] sm:$0xff]
    %v1582 = vld [vmem:[#allocation13 + $0x10c] sm:$0xff]
    %v1583 = vld [vmem:[#allocation13 + $0x114] sm:$0xf]
    %v1584 = vld [vmem:[#allocation13 + $0x118] sm:$0xff]
    %v1585 = vld [vmem:[#allocation13 + $0x120] sm:$0xff]
    %v1586 = vld [vmem:[#allocation13 + $0x128] sm:$0xf]
    %v1587 = vld [vmem:[#allocation13 + $0x12c] sm:$0xff]
    %v1588 = vld [vmem:[#allocation13 + $0x134] sm:$0xff]
    %v1589 = vld [vmem:[#allocation13 + $0x13c] sm:$0xf]
    %v1590 = vld [vmem:[#allocation15] sm:$0x1f]
    %v1592 = vperm.slane %v1590, 0
    %v1593 = vperm.slane %v1590, 1
    %v1594 = vperm.slane %v1590, 2
    %v1595 = vperm.slane %v1590, 3
    %v1596 = vperm.slane %v1590, 4
    %v1650 = vunpack.c.l.b16 %v1542
    %v1651 = vunpack.c.h.b16 %v1542
    %v1652 = vunpack.c.l.b16 %v1543
    %v1653 = vunpack.c.h.b16 %v1543
    %v1654 = vunpack.c.l.b16 %v1544
    %v1655 = vunpack.c.l.b16 %v1545
    %v1656 = vunpack.c.h.b16 %v1545
    %v1657 = vunpack.c.l.b16 %v1546
    %v1658 = vunpack.c.h.b16 %v1546
    %v1659 = vunpack.c.l.b16 %v1547
    %v1660 = vunpack.c.l.b16 %v1548
    %v1661 = vunpack.c.h.b16 %v1548
    %v1662 = vunpack.c.l.b16 %v1549
    %v1663 = vunpack.c.h.b16 %v1549
    %v1664 = vunpack.c.l.b16 %v1550
    %v1665 = vunpack.c.l.b16 %v1551
    %v1666 = vunpack.c.h.b16 %v1551
    %v1667 = vunpack.c.l.b16 %v1552
    %v1668 = vunpack.c.h.b16 %v1552
    %v1669 = vunpack.c.l.b16 %v1553
    %v1670 = vunpack.c.l.b16 %v1554
    %v1671 = vunpack.c.h.b16 %v1554
    %v1672 = vunpack.c.l.b16 %v1555
    %v1673 = vunpack.c.h.b16 %v1555
    %v1674 = vunpack.c.l.b16 %v1556
    %v1675 = vunpack.c.l.b16 %v1557
    %v1676 = vunpack.c.h.b16 %v1557
    %v1677 = vunpack.c.l.b16 %v1558
    %v1678 = vunpack.c.h.b16 %v1558
    %v1679 = vunpack.c.l.b16 %v1559
    %v1680 = vunpack.c.l.b16 %v1560
    %v1681 = vunpack.c.h.b16 %v1560
    %v1682 = vunpack.c.l.b16 %v1561
    %v1683 = vunpack.c.h.b16 %v1561
    %v1684 = vunpack.c.l.b16 %v1562
    %v1685 = vunpack.c.l.b16 %v1563
    %v1686 = vunpack.c.h.b16 %v1563
    %v1687 = vunpack.c.l.b16 %v1564
    %v1688 = vunpack.c.h.b16 %v1564
    %v1689 = vunpack.c.l.b16 %v1565
    %v1690 = vunpack.c.l.b16 %v1566
    %v1691 = vunpack.c.h.b16 %v1566
    %v1692 = vunpack.c.l.b16 %v1567
    %v1693 = vunpack.c.h.b16 %v1567
    %v1694 = vunpack.c.l.b16 %v1568
    %v1695 = vunpack.c.l.b16 %v1569
    %v1696 = vunpack.c.h.b16 %v1569
    %v1697 = vunpack.c.l.b16 %v1570
    %v1698 = vunpack.c.h.b16 %v1570
    %v1699 = vunpack.c.l.b16 %v1571
    %v1700 = vunpack.c.l.b16 %v1572
    %v1701 = vunpack.c.h.b16 %v1572
    %v1702 = vunpack.c.l.b16 %v1573
    %v1703 = vunpack.c.h.b16 %v1573
    %v1704 = vunpack.c.l.b16 %v1574
    %v1705 = vunpack.c.l.b16 %v1575
    %v1706 = vunpack.c.h.b16 %v1575
    %v1707 = vunpack.c.l.b16 %v1576
    %v1708 = vunpack.c.h.b16 %v1576
    %v1709 = vunpack.c.l.b16 %v1577
    %v1710 = vunpack.c.l.b16 %v1578
    %v1711 = vunpack.c.h.b16 %v1578
    %v1712 = vunpack.c.l.b16 %v1579
    %v1713 = vunpack.c.h.b16 %v1579
    %v1714 = vunpack.c.l.b16 %v1580
    %v1715 = vunpack.c.l.b16 %v1581
    %v1716 = vunpack.c.h.b16 %v1581
    %v1717 = vunpack.c.l.b16 %v1582
    %v1718 = vunpack.c.h.b16 %v1582
    %v1719 = vunpack.c.l.b16 %v1583
    %v1720 = vunpack.c.l.b16 %v1584
    %v1721 = vunpack.c.h.b16 %v1584
    %v1722 = vunpack.c.l.b16 %v1585
    %v1723 = vunpack.c.h.b16 %v1585
    %v1724 = vunpack.c.l.b16 %v1586
    %v1725 = vunpack.c.l.b16 %v1587
    %v1726 = vunpack.c.h.b16 %v1587
    %v1727 = vunpack.c.l.b16 %v1588
    %v1728 = vunpack.c.h.b16 %v1588
    %v1729 = vunpack.c.l.b16 %v1589
    %v1730 = vpack.c.b16 %v1655, %v1650
    %v1731 = vpack.c.b16 %v1656, %v1651
    %v1732 = vpack.c.b16 %v1657, %v1652
    %v1733 = vpack.c.b16 %v1658, %v1653
    %v1734 = vpack.c.b16 %v1659, %v1654
    %v1735 = vpack.c.b16 %v1665, %v1660
    %v1736 = vpack.c.b16 %v1666, %v1661
    %v1737 = vpack.c.b16 %v1667, %v1662
    %v1738 = vpack.c.b16 %v1668, %v1663
    %v1739 = vpack.c.b16 %v1669, %v1664
    %v1740 = vpack.c.b16 %v1675, %v1670
    %v1741 = vpack.c.b16 %v1676, %v1671
    %v1742 = vpack.c.b16 %v1677, %v1672
    %v1743 = vpack.c.b16 %v1678, %v1673
    %v1744 = vpack.c.b16 %v1679, %v1674
    %v1745 = vpack.c.b16 %v1685, %v1680
    %v1746 = vpack.c.b16 %v1686, %v1681
    %v1747 = vpack.c.b16 %v1687, %v1682
    %v1748 = vpack.c.b16 %v1688, %v1683
    %v1749 = vpack.c.b16 %v1689, %v1684
    %v1750 = vpack.c.b16 %v1695, %v1690
    %v1751 = vpack.c.b16 %v1696, %v1691
    %v1752 = vpack.c.b16 %v1697, %v1692
    %v1753 = vpack.c.b16 %v1698, %v1693
    %v1754 = vpack.c.b16 %v1699, %v1694
    %v1755 = vpack.c.b16 %v1705, %v1700
    %v1756 = vpack.c.b16 %v1706, %v1701
    %v1757 = vpack.c.b16 %v1707, %v1702
    %v1758 = vpack.c.b16 %v1708, %v1703
    %v1759 = vpack.c.b16 %v1709, %v1704
    %v1760 = vpack.c.b16 %v1715, %v1710
    %v1761 = vpack.c.b16 %v1716, %v1711
    %v1762 = vpack.c.b16 %v1717, %v1712
    %v1763 = vpack.c.b16 %v1718, %v1713
    %v1764 = vpack.c.b16 %v1719, %v1714
    %v1765 = vpack.c.b16 %v1725, %v1720
    %v1766 = vpack.c.b16 %v1726, %v1721
    %v1767 = vpack.c.b16 %v1727, %v1722
    %v1768 = vpack.c.b16 %v1728, %v1723
    %v1769 = vpack.c.b16 %v1729, %v1724
    %1810 = vmatpush.bf16.msra.mxu0 %v1765
    %1811 = vmatpush.bf16.msra.mxu0 %v1760
    %1812 = vmatpush.bf16.msra.mxu0 %v1755
    %1813 = vmatpush.bf16.msra.mxu0 %v1750
    %1814 = vmatpush.bf16.msra.mxu0 %v1745
    %1815 = vmatpush.bf16.msra.mxu0 %v1740
    %1816 = vmatpush.bf16.msra.mxu0 %v1735
    %1817 = vmatpush.bf16.msra.mxu0 %v1730
    %1818 = vmatmul.bf16.gmra.mxu0 %v1541
    %v1819 = vpop.f32.mrf.mxu0
    %v1820 = vadd.f32 %v1592, %v1819
    %v1821 = vpop.f32.mrf.mxu0
    %1822 = vdwg.mxu0
    %1823 = vmatpush.bf16.msra.mxu0 %v1766
    %1824 = vmatpush.bf16.msra.mxu0 %v1761
    %1825 = vmatpush.bf16.msra.mxu0 %v1756
    %1826 = vmatpush.bf16.msra.mxu0 %v1751
    %1827 = vmatpush.bf16.msra.mxu0 %v1746
    %1828 = vmatpush.bf16.msra.mxu0 %v1741
    %1829 = vmatpush.bf16.msra.mxu0 %v1736
    %1830 = vmatpush.bf16.msra.mxu0 %v1731
    %1831 = vmatmul.bf16.gmra.mxu0 %v1541
    %v1832 = vpop.f32.mrf.mxu0
    %v1833 = vadd.f32 %v1593, %v1832
    %v1834 = vpop.f32.mrf.mxu0
    %1835 = vdwg.mxu0
    %1836 = vmatpush.bf16.msra.mxu0 %v1767
    %1837 = vmatpush.bf16.msra.mxu0 %v1762
    %1838 = vmatpush.bf16.msra.mxu0 %v1757
    %1839 = vmatpush.bf16.msra.mxu0 %v1752
    %1840 = vmatpush.bf16.msra.mxu0 %v1747
    %1841 = vmatpush.bf16.msra.mxu0 %v1742
    %1842 = vmatpush.bf16.msra.mxu0 %v1737
    %1843 = vmatpush.bf16.msra.mxu0 %v1732
    %1844 = vmatmul.bf16.gmra.mxu0 %v1541
    %v1845 = vpop.f32.mrf.mxu0
    %v1846 = vadd.f32 %v1594, %v1845
    %v1847 = vpop.f32.mrf.mxu0
    %1848 = vdwg.mxu0
    %1849 = vmatpush.bf16.msra.mxu0 %v1768
    %1850 = vmatpush.bf16.msra.mxu0 %v1763
    %1851 = vmatpush.bf16.msra.mxu0 %v1758
    %1852 = vmatpush.bf16.msra.mxu0 %v1753
    %1853 = vmatpush.bf16.msra.mxu0 %v1748
    %1854 = vmatpush.bf16.msra.mxu0 %v1743
    %1855 = vmatpush.bf16.msra.mxu0 %v1738
    %1856 = vmatpush.bf16.msra.mxu0 %v1733
    %1857 = vmatmul.bf16.gmra.mxu0 %v1541
    %v1858 = vpop.f32.mrf.mxu0
    %v1859 = vadd.f32 %v1595, %v1858
    %v1860 = vpop.f32.mrf.mxu0
    %1861 = vdwg.mxu0
    %1862 = vmatpush.bf16.msra.mxu0 %v1769
    %1863 = vmatpush.bf16.msra.mxu0 %v1764
    %1864 = vmatpush.bf16.msra.mxu0 %v1759
    %1865 = vmatpush.bf16.msra.mxu0 %v1754
    %1866 = vmatpush.bf16.msra.mxu0 %v1749
    %1867 = vmatpush.bf16.msra.mxu0 %v1744
    %1868 = vmatpush.bf16.msra.mxu0 %v1739
    %1869 = vmatpush.bf16.msra.mxu0 %v1734
    %1870 = vmatmul.bf16.gmra.mxu0 %v1541
    %v1871 = vpop.f32.mrf.mxu0
    %v1872 = vadd.f32 %v1596, %v1871
    %v1873 = vpop.f32.mrf.mxu0
    %1874 = vdwg.mxu0
    %v1875 = vmul.f32 %v1820, 0.5
    %v1876 = vmul.f32 %v1833, 0.5
    %v1877 = vmul.f32 %v1846, 0.5
    %v1878 = vmul.f32 %v1859, 0.5
    %v1879 = vmul.f32 %v1872, 0.5
    %v1880 = vtanh.pop %v1875
    %v1881 = vtanh.pop %v1876
    %v1882 = vtanh.pop %v1877
    %v1883 = vtanh.pop %v1878
    %v1884 = vtanh.pop %v1879
    %v1885 = vmul.f32 %v1880, 0.5
    %v1886 = vmul.f32 %v1881, 0.5
    %v1887 = vmul.f32 %v1882, 0.5
    %v1888 = vmul.f32 %v1883, 0.5
    %v1889 = vmul.f32 %v1884, 0.5
    %v1890 = vadd.f32 %v1885, 0.5
    %v1891 = vadd.f32 %v1886, 0.5
    %v1892 = vadd.f32 %v1887, 0.5
    %v1893 = vadd.f32 %v1888, 0.5
    %v1894 = vadd.f32 %v1889, 0.5
    %v1895 = vpack.c.bf16 %v1890, %v1890
    %v1896 = vpack.c.bf16 %v1891, %v1891
    %v1897 = vpack.c.bf16 %v1892, %v1892
    %v1898 = vpack.c.bf16 %v1893, %v1893
    %v1899 = vpack.c.bf16 %v1894, %v1894
    %v1900 = vld [vmem:[#allocation16] sm:$0xff]
    %v1901 = vld [vmem:[#allocation16 + $0x8] sm:$0xff]
    %v1902 = vld [vmem:[#allocation16 + $0x10] sm:$0xff]
    %v1903 = vld [vmem:[#allocation16 + $0x18] sm:$0xff]
    %v1904 = vld [vmem:[#allocation16 + $0x20] sm:$0xff]
    %v1905 = vld [vmem:[#allocation16 + $0x28] sm:$0xff]
    %v1906 = vld [vmem:[#allocation16 + $0x30] sm:$0xff]
    %v1907 = vld [vmem:[#allocation16 + $0x38] sm:$0xff]
    %v1908 = vld [vmem:[#allocation16 + $0x40] sm:$0xff]
    %v1909 = vld [vmem:[#allocation16 + $0x48] sm:$0xff]
    %v1910 = vld [vmem:[#allocation16 + $0x50] sm:$0xff]
    %v1911 = vld [vmem:[#allocation16 + $0x58] sm:$0xff]
    %v1912 = vld [vmem:[#allocation16 + $0x60] sm:$0xff]
    %v1913 = vld [vmem:[#allocation16 + $0x68] sm:$0xff]
    %v1914 = vld [vmem:[#allocation16 + $0x70] sm:$0xff]
    %v1915 = vld [vmem:[#allocation16 + $0x78] sm:$0xff]
    %v1916 = vld [vmem:[#allocation16 + $0x80] sm:$0xff]
    %v1917 = vld [vmem:[#allocation16 + $0x88] sm:$0xff]
    %v1918 = vld [vmem:[#allocation16 + $0x90] sm:$0xff]
    %v1919 = vld [vmem:[#allocation16 + $0x98] sm:$0xff]
    %v1920 = vld [vmem:[#allocation16 + $0xa0] sm:$0xff]
    %v1921 = vld [vmem:[#allocation16 + $0xa8] sm:$0xff]
    %v1922 = vld [vmem:[#allocation16 + $0xb0] sm:$0xff]
    %v1923 = vld [vmem:[#allocation16 + $0xb8] sm:$0xff]
    %v1924 = vld [vmem:[#allocation16 + $0xc0] sm:$0xff]
    %v1925 = vld [vmem:[#allocation16 + $0xc8] sm:$0xff]
    %v1926 = vld [vmem:[#allocation16 + $0xd0] sm:$0xff]
    %v1927 = vld [vmem:[#allocation16 + $0xd8] sm:$0xff]
    %v1928 = vld [vmem:[#allocation16 + $0xe0] sm:$0xff]
    %v1929 = vld [vmem:[#allocation16 + $0xe8] sm:$0xff]
    %v1930 = vld [vmem:[#allocation16 + $0xf0] sm:$0xff]
    %v1931 = vld [vmem:[#allocation16 + $0xf8] sm:$0xff]
    %v1932 = vld [vmem:[#allocation16 + $0x100] sm:$0xff]
    %v1933 = vld [vmem:[#allocation16 + $0x108] sm:$0xff]
    %v1934 = vld [vmem:[#allocation16 + $0x110] sm:$0xff]
    %v1935 = vld [vmem:[#allocation16 + $0x118] sm:$0xff]
    %v1936 = vld [vmem:[#allocation16 + $0x120] sm:$0xff]
    %v1937 = vld [vmem:[#allocation16 + $0x128] sm:$0xff]
    %v1938 = vld [vmem:[#allocation16 + $0x130] sm:$0xff]
    %v1939 = vld [vmem:[#allocation16 + $0x138] sm:$0xff]
    %v1940 = vld [vmem:[#allocation16 + $0x140] sm:$0xff]
    %v1941 = vld [vmem:[#allocation16 + $0x148] sm:$0xff]
    %v1942 = vld [vmem:[#allocation16 + $0x150] sm:$0xff]
    %v1943 = vld [vmem:[#allocation16 + $0x158] sm:$0xff]
    %v1944 = vld [vmem:[#allocation16 + $0x160] sm:$0xff]
    %v1945 = vld [vmem:[#allocation16 + $0x168] sm:$0xff]
    %v1946 = vld [vmem:[#allocation16 + $0x170] sm:$0xff]
    %v1947 = vld [vmem:[#allocation16 + $0x178] sm:$0xff]
    %v1948 = vld [vmem:[#allocation16 + $0x180] sm:$0xff]
    %v1949 = vld [vmem:[#allocation16 + $0x188] sm:$0xff]
    %v1950 = vld [vmem:[#allocation16 + $0x190] sm:$0xff]
    %v1951 = vld [vmem:[#allocation16 + $0x198] sm:$0xff]
    %v1952 = vld [vmem:[#allocation16 + $0x1a0] sm:$0xff]
    %v1953 = vld [vmem:[#allocation16 + $0x1a8] sm:$0xff]
    %v1954 = vld [vmem:[#allocation16 + $0x1b0] sm:$0xff]
    %v1955 = vld [vmem:[#allocation16 + $0x1b8] sm:$0xff]
    %v1956 = vld [vmem:[#allocation16 + $0x1c0] sm:$0xff]
    %v1957 = vld [vmem:[#allocation16 + $0x1c8] sm:$0xff]
    %v1958 = vld [vmem:[#allocation16 + $0x1d0] sm:$0xff]
    %v1959 = vld [vmem:[#allocation16 + $0x1d8] sm:$0xff]
    %v1960 = vld [vmem:[#allocation16 + $0x1e0] sm:$0xff]
    %v1961 = vld [vmem:[#allocation16 + $0x1e8] sm:$0xff]
    %v1962 = vld [vmem:[#allocation16 + $0x1f0] sm:$0xff]
    %v1963 = vld [vmem:[#allocation16 + $0x1f8] sm:$0xff]
    %v1964 = vld [vmem:[#allocation16 + $0x200] sm:$0xff]
    %v1965 = vld [vmem:[#allocation16 + $0x208] sm:$0xff]
    %v1966 = vld [vmem:[#allocation16 + $0x210] sm:$0xff]
    %v1967 = vld [vmem:[#allocation16 + $0x218] sm:$0xff]
    %v1968 = vld [vmem:[#allocation16 + $0x220] sm:$0xff]
    %v1969 = vld [vmem:[#allocation16 + $0x228] sm:$0xff]
    %v1970 = vld [vmem:[#allocation16 + $0x230] sm:$0xff]
    %v1971 = vld [vmem:[#allocation16 + $0x238] sm:$0xff]
    %v1972 = vld [vmem:[#allocation16 + $0x240] sm:$0xff]
    %v1973 = vld [vmem:[#allocation16 + $0x248] sm:$0xff]
    %v1974 = vld [vmem:[#allocation16 + $0x250] sm:$0xff]
    %v1975 = vld [vmem:[#allocation16 + $0x258] sm:$0xff]
    %v1976 = vld [vmem:[#allocation16 + $0x260] sm:$0xff]
    %v1977 = vld [vmem:[#allocation16 + $0x268] sm:$0xff]
    %v1978 = vld [vmem:[#allocation16 + $0x270] sm:$0xff]
    %v1979 = vld [vmem:[#allocation16 + $0x278] sm:$0xff]
    %v1980 = vld [vmem:[#allocation18] sm:$0x3]
    %v1982 = vperm.slane %v1980, 0
    %v1983 = vperm.slane %v1980, 1
    %v2066 = vunpack.c.l.b16 %v1900
    %v2067 = vunpack.c.h.b16 %v1900
    %v2068 = vunpack.c.l.b16 %v1901
    %v2069 = vunpack.c.h.b16 %v1901
    %v2070 = vunpack.c.l.b16 %v1902
    %v2071 = vunpack.c.h.b16 %v1902
    %v2072 = vunpack.c.l.b16 %v1903
    %v2073 = vunpack.c.h.b16 %v1903
    %v2074 = vunpack.c.l.b16 %v1904
    %v2075 = vunpack.c.h.b16 %v1904
    %v2076 = vunpack.c.l.b16 %v1905
    %v2077 = vunpack.c.h.b16 %v1905
    %v2078 = vunpack.c.l.b16 %v1906
    %v2079 = vunpack.c.h.b16 %v1906
    %v2080 = vunpack.c.l.b16 %v1907
    %v2081 = vunpack.c.h.b16 %v1907
    %v2082 = vunpack.c.l.b16 %v1908
    %v2083 = vunpack.c.h.b16 %v1908
    %v2084 = vunpack.c.l.b16 %v1909
    %v2085 = vunpack.c.h.b16 %v1909
    %v2086 = vunpack.c.l.b16 %v1910
    %v2087 = vunpack.c.h.b16 %v1910
    %v2088 = vunpack.c.l.b16 %v1911
    %v2089 = vunpack.c.h.b16 %v1911
    %v2090 = vunpack.c.l.b16 %v1912
    %v2091 = vunpack.c.h.b16 %v1912
    %v2092 = vunpack.c.l.b16 %v1913
    %v2093 = vunpack.c.h.b16 %v1913
    %v2094 = vunpack.c.l.b16 %v1914
    %v2095 = vunpack.c.h.b16 %v1914
    %v2096 = vunpack.c.l.b16 %v1915
    %v2097 = vunpack.c.h.b16 %v1915
    %v2098 = vunpack.c.l.b16 %v1916
    %v2099 = vunpack.c.h.b16 %v1916
    %v2100 = vunpack.c.l.b16 %v1917
    %v2101 = vunpack.c.h.b16 %v1917
    %v2102 = vunpack.c.l.b16 %v1918
    %v2103 = vunpack.c.h.b16 %v1918
    %v2104 = vunpack.c.l.b16 %v1919
    %v2105 = vunpack.c.h.b16 %v1919
    %v2106 = vunpack.c.l.b16 %v1920
    %v2107 = vunpack.c.h.b16 %v1920
    %v2108 = vunpack.c.l.b16 %v1921
    %v2109 = vunpack.c.h.b16 %v1921
    %v2110 = vunpack.c.l.b16 %v1922
    %v2111 = vunpack.c.h.b16 %v1922
    %v2112 = vunpack.c.l.b16 %v1923
    %v2113 = vunpack.c.h.b16 %v1923
    %v2114 = vunpack.c.l.b16 %v1924
    %v2115 = vunpack.c.h.b16 %v1924
    %v2116 = vunpack.c.l.b16 %v1925
    %v2117 = vunpack.c.h.b16 %v1925
    %v2118 = vunpack.c.l.b16 %v1926
    %v2119 = vunpack.c.h.b16 %v1926
    %v2120 = vunpack.c.l.b16 %v1927
    %v2121 = vunpack.c.h.b16 %v1927
    %v2122 = vunpack.c.l.b16 %v1928
    %v2123 = vunpack.c.h.b16 %v1928
    %v2124 = vunpack.c.l.b16 %v1929
    %v2125 = vunpack.c.h.b16 %v1929
    %v2126 = vunpack.c.l.b16 %v1930
    %v2127 = vunpack.c.h.b16 %v1930
    %v2128 = vunpack.c.l.b16 %v1931
    %v2129 = vunpack.c.h.b16 %v1931
    %v2130 = vunpack.c.l.b16 %v1932
    %v2131 = vunpack.c.h.b16 %v1932
    %v2132 = vunpack.c.l.b16 %v1933
    %v2133 = vunpack.c.h.b16 %v1933
    %v2134 = vunpack.c.l.b16 %v1934
    %v2135 = vunpack.c.h.b16 %v1934
    %v2136 = vunpack.c.l.b16 %v1935
    %v2137 = vunpack.c.h.b16 %v1935
    %v2138 = vunpack.c.l.b16 %v1936
    %v2139 = vunpack.c.h.b16 %v1936
    %v2140 = vunpack.c.l.b16 %v1937
    %v2141 = vunpack.c.h.b16 %v1937
    %v2142 = vunpack.c.l.b16 %v1938
    %v2143 = vunpack.c.h.b16 %v1938
    %v2144 = vunpack.c.l.b16 %v1939
    %v2145 = vunpack.c.h.b16 %v1939
    %v2146 = vunpack.c.l.b16 %v1940
    %v2147 = vunpack.c.h.b16 %v1940
    %v2148 = vunpack.c.l.b16 %v1941
    %v2149 = vunpack.c.h.b16 %v1941
    %v2150 = vunpack.c.l.b16 %v1942
    %v2151 = vunpack.c.h.b16 %v1942
    %v2152 = vunpack.c.l.b16 %v1943
    %v2153 = vunpack.c.h.b16 %v1943
    %v2154 = vunpack.c.l.b16 %v1944
    %v2155 = vunpack.c.h.b16 %v1944
    %v2156 = vunpack.c.l.b16 %v1945
    %v2157 = vunpack.c.h.b16 %v1945
    %v2158 = vunpack.c.l.b16 %v1946
    %v2159 = vunpack.c.h.b16 %v1946
    %v2160 = vunpack.c.l.b16 %v1947
    %v2161 = vunpack.c.h.b16 %v1947
    %v2162 = vunpack.c.l.b16 %v1948
    %v2163 = vunpack.c.h.b16 %v1948
    %v2164 = vunpack.c.l.b16 %v1949
    %v2165 = vunpack.c.h.b16 %v1949
    %v2166 = vunpack.c.l.b16 %v1950
    %v2167 = vunpack.c.h.b16 %v1950
    %v2168 = vunpack.c.l.b16 %v1951
    %v2169 = vunpack.c.h.b16 %v1951
    %v2170 = vunpack.c.l.b16 %v1952
    %v2171 = vunpack.c.h.b16 %v1952
    %v2172 = vunpack.c.l.b16 %v1953
    %v2173 = vunpack.c.h.b16 %v1953
    %v2174 = vunpack.c.l.b16 %v1954
    %v2175 = vunpack.c.h.b16 %v1954
    %v2176 = vunpack.c.l.b16 %v1955
    %v2177 = vunpack.c.h.b16 %v1955
    %v2178 = vunpack.c.l.b16 %v1956
    %v2179 = vunpack.c.h.b16 %v1956
    %v2180 = vunpack.c.l.b16 %v1957
    %v2181 = vunpack.c.h.b16 %v1957
    %v2182 = vunpack.c.l.b16 %v1958
    %v2183 = vunpack.c.h.b16 %v1958
    %v2184 = vunpack.c.l.b16 %v1959
    %v2185 = vunpack.c.h.b16 %v1959
    %v2186 = vunpack.c.l.b16 %v1960
    %v2187 = vunpack.c.h.b16 %v1960
    %v2188 = vunpack.c.l.b16 %v1961
    %v2189 = vunpack.c.h.b16 %v1961
    %v2190 = vunpack.c.l.b16 %v1962
    %v2191 = vunpack.c.h.b16 %v1962
    %v2192 = vunpack.c.l.b16 %v1963
    %v2193 = vunpack.c.h.b16 %v1963
    %v2194 = vunpack.c.l.b16 %v1964
    %v2195 = vunpack.c.h.b16 %v1964
    %v2196 = vunpack.c.l.b16 %v1965
    %v2197 = vunpack.c.h.b16 %v1965
    %v2198 = vunpack.c.l.b16 %v1966
    %v2199 = vunpack.c.h.b16 %v1966
    %v2200 = vunpack.c.l.b16 %v1967
    %v2201 = vunpack.c.h.b16 %v1967
    %v2202 = vunpack.c.l.b16 %v1968
    %v2203 = vunpack.c.h.b16 %v1968
    %v2204 = vunpack.c.l.b16 %v1969
    %v2205 = vunpack.c.h.b16 %v1969
    %v2206 = vunpack.c.l.b16 %v1970
    %v2207 = vunpack.c.h.b16 %v1970
    %v2208 = vunpack.c.l.b16 %v1971
    %v2209 = vunpack.c.h.b16 %v1971
    %v2210 = vunpack.c.l.b16 %v1972
    %v2211 = vunpack.c.h.b16 %v1972
    %v2212 = vunpack.c.l.b16 %v1973
    %v2213 = vunpack.c.h.b16 %v1973
    %v2214 = vunpack.c.l.b16 %v1974
    %v2215 = vunpack.c.h.b16 %v1974
    %v2216 = vunpack.c.l.b16 %v1975
    %v2217 = vunpack.c.h.b16 %v1975
    %v2218 = vunpack.c.l.b16 %v1976
    %v2219 = vunpack.c.h.b16 %v1976
    %v2220 = vunpack.c.l.b16 %v1977
    %v2221 = vunpack.c.h.b16 %v1977
    %v2222 = vunpack.c.l.b16 %v1978
    %v2223 = vunpack.c.h.b16 %v1978
    %v2224 = vunpack.c.l.b16 %v1979
    %v2225 = vunpack.c.h.b16 %v1979
    %v2226 = vpack.c.b16 %v2068, %v2066
    %v2227 = vpack.c.b16 %v2069, %v2067
    %v2228 = vpack.c.b16 %v2072, %v2070
    %v2229 = vpack.c.b16 %v2073, %v2071
    %v2230 = vpack.c.b16 %v2076, %v2074
    %v2231 = vpack.c.b16 %v2077, %v2075
    %v2232 = vpack.c.b16 %v2080, %v2078
    %v2233 = vpack.c.b16 %v2081, %v2079
    %v2234 = vpack.c.b16 %v2084, %v2082
    %v2235 = vpack.c.b16 %v2085, %v2083
    %v2236 = vpack.c.b16 %v2088, %v2086
    %v2237 = vpack.c.b16 %v2089, %v2087
    %v2238 = vpack.c.b16 %v2092, %v2090
    %v2239 = vpack.c.b16 %v2093, %v2091
    %v2240 = vpack.c.b16 %v2096, %v2094
    %v2241 = vpack.c.b16 %v2097, %v2095
    %v2242 = vpack.c.b16 %v2100, %v2098
    %v2243 = vpack.c.b16 %v2101, %v2099
    %v2244 = vpack.c.b16 %v2104, %v2102
    %v2245 = vpack.c.b16 %v2105, %v2103
    %v2246 = vpack.c.b16 %v2108, %v2106
    %v2247 = vpack.c.b16 %v2109, %v2107
    %v2248 = vpack.c.b16 %v2112, %v2110
    %v2249 = vpack.c.b16 %v2113, %v2111
    %v2250 = vpack.c.b16 %v2116, %v2114
    %v2251 = vpack.c.b16 %v2117, %v2115
    %v2252 = vpack.c.b16 %v2120, %v2118
    %v2253 = vpack.c.b16 %v2121, %v2119
    %v2254 = vpack.c.b16 %v2124, %v2122
    %v2255 = vpack.c.b16 %v2125, %v2123
    %v2256 = vpack.c.b16 %v2128, %v2126
    %v2257 = vpack.c.b16 %v2129, %v2127
    %v2258 = vpack.c.b16 %v2132, %v2130
    %v2259 = vpack.c.b16 %v2133, %v2131
    %v2260 = vpack.c.b16 %v2136, %v2134
    %v2261 = vpack.c.b16 %v2137, %v2135
    %v2262 = vpack.c.b16 %v2140, %v2138
    %v2263 = vpack.c.b16 %v2141, %v2139
    %v2264 = vpack.c.b16 %v2144, %v2142
    %v2265 = vpack.c.b16 %v2145, %v2143
    %v2266 = vpack.c.b16 %v2148, %v2146
    %v2267 = vpack.c.b16 %v2149, %v2147
    %v2268 = vpack.c.b16 %v2152, %v2150
    %v2269 = vpack.c.b16 %v2153, %v2151
    %v2270 = vpack.c.b16 %v2156, %v2154
    %v2271 = vpack.c.b16 %v2157, %v2155
    %v2272 = vpack.c.b16 %v2160, %v2158
    %v2273 = vpack.c.b16 %v2161, %v2159
    %v2274 = vpack.c.b16 %v2164, %v2162
    %v2275 = vpack.c.b16 %v2165, %v2163
    %v2276 = vpack.c.b16 %v2168, %v2166
    %v2277 = vpack.c.b16 %v2169, %v2167
    %v2278 = vpack.c.b16 %v2172, %v2170
    %v2279 = vpack.c.b16 %v2173, %v2171
    %v2280 = vpack.c.b16 %v2176, %v2174
    %v2281 = vpack.c.b16 %v2177, %v2175
    %v2282 = vpack.c.b16 %v2180, %v2178
    %v2283 = vpack.c.b16 %v2181, %v2179
    %v2284 = vpack.c.b16 %v2184, %v2182
    %v2285 = vpack.c.b16 %v2185, %v2183
    %v2286 = vpack.c.b16 %v2188, %v2186
    %v2287 = vpack.c.b16 %v2189, %v2187
    %v2288 = vpack.c.b16 %v2192, %v2190
    %v2289 = vpack.c.b16 %v2193, %v2191
    %v2290 = vpack.c.b16 %v2196, %v2194
    %v2291 = vpack.c.b16 %v2197, %v2195
    %v2292 = vpack.c.b16 %v2200, %v2198
    %v2293 = vpack.c.b16 %v2201, %v2199
    %v2294 = vpack.c.b16 %v2204, %v2202
    %v2295 = vpack.c.b16 %v2205, %v2203
    %v2296 = vpack.c.b16 %v2208, %v2206
    %v2297 = vpack.c.b16 %v2209, %v2207
    %v2298 = vpack.c.b16 %v2212, %v2210
    %v2299 = vpack.c.b16 %v2213, %v2211
    %v2300 = vpack.c.b16 %v2216, %v2214
    %v2301 = vpack.c.b16 %v2217, %v2215
    %v2302 = vpack.c.b16 %v2220, %v2218
    %v2303 = vpack.c.b16 %v2221, %v2219
    %v2304 = vpack.c.b16 %v2224, %v2222
    %v2305 = vpack.c.b16 %v2225, %v2223
    %2386 = vmatpush.bf16.msra.mxu0 %v2240
    %2387 = vmatpush.bf16.msra.mxu0 %v2238
    %2388 = vmatpush.bf16.msra.mxu0 %v2236
    %2389 = vmatpush.bf16.msra.mxu0 %v2234
    %2390 = vmatpush.bf16.msra.mxu0 %v2232
    %2391 = vmatpush.bf16.msra.mxu0 %v2230
    %2392 = vmatpush.bf16.msra.mxu0 %v2228
    %2393 = vmatpush.bf16.msra.mxu0 %v2226
    %2394 = vmatmul.bf16.gmra.mxu0 %v1895
    %v2395 = vpop.f32.mrf.mxu0
    %v2396 = vadd.f32 %v1982, %v2395
    %v2397 = vpop.f32.mrf.mxu0
    %2398 = vdwg.mxu0
    %2399 = vmatpush.bf16.msra.mxu0 %v2256
    %2400 = vmatpush.bf16.msra.mxu0 %v2254
    %2401 = vmatpush.bf16.msra.mxu0 %v2252
    %2402 = vmatpush.bf16.msra.mxu0 %v2250
    %2403 = vmatpush.bf16.msra.mxu0 %v2248
    %2404 = vmatpush.bf16.msra.mxu0 %v2246
    %2405 = vmatpush.bf16.msra.mxu0 %v2244
    %2406 = vmatpush.bf16.msra.mxu0 %v2242
    %2407 = vmatmul.bf16.gmra.mxu0 %v1896
    %v2408 = vpop.f32.mrf.mxu0
    %v2409 = vadd.f32 %v2396, %v2408
    %v2410 = vpop.f32.mrf.mxu0
    %2411 = vdwg.mxu0
    %2412 = vmatpush.bf16.msra.mxu0 %v2272
    %2413 = vmatpush.bf16.msra.mxu0 %v2270
    %2414 = vmatpush.bf16.msra.mxu0 %v2268
    %2415 = vmatpush.bf16.msra.mxu0 %v2266
    %2416 = vmatpush.bf16.msra.mxu0 %v2264
    %2417 = vmatpush.bf16.msra.mxu0 %v2262
    %2418 = vmatpush.bf16.msra.mxu0 %v2260
    %2419 = vmatpush.bf16.msra.mxu0 %v2258
    %2420 = vmatmul.bf16.gmra.mxu0 %v1897
    %v2421 = vpop.f32.mrf.mxu0
    %v2422 = vadd.f32 %v2409, %v2421
    %v2423 = vpop.f32.mrf.mxu0
    %2424 = vdwg.mxu0
    %2425 = vmatpush.bf16.msra.mxu0 %v2288
    %2426 = vmatpush.bf16.msra.mxu0 %v2286
    %2427 = vmatpush.bf16.msra.mxu0 %v2284
    %2428 = vmatpush.bf16.msra.mxu0 %v2282
    %2429 = vmatpush.bf16.msra.mxu0 %v2280
    %2430 = vmatpush.bf16.msra.mxu0 %v2278
    %2431 = vmatpush.bf16.msra.mxu0 %v2276
    %2432 = vmatpush.bf16.msra.mxu0 %v2274
    %2433 = vmatmul.bf16.gmra.mxu0 %v1898
    %v2434 = vpop.f32.mrf.mxu0
    %v2435 = vadd.f32 %v2422, %v2434
    %v2436 = vpop.f32.mrf.mxu0
    %2437 = vdwg.mxu0
    %2438 = vmatpush.bf16.msra.mxu0 %v2304
    %2439 = vmatpush.bf16.msra.mxu0 %v2302
    %2440 = vmatpush.bf16.msra.mxu0 %v2300
    %2441 = vmatpush.bf16.msra.mxu0 %v2298
    %2442 = vmatpush.bf16.msra.mxu0 %v2296
    %2443 = vmatpush.bf16.msra.mxu0 %v2294
    %2444 = vmatpush.bf16.msra.mxu0 %v2292
    %2445 = vmatpush.bf16.msra.mxu0 %v2290
    %2446 = vmatmul.bf16.gmra.mxu0 %v1899
    %v2447 = vpop.f32.mrf.mxu0
    %v2448 = vadd.f32 %v2435, %v2447
    %v2449 = vpop.f32.mrf.mxu0
    %2450 = vdwg.mxu0
    %2451 = vmatpush.bf16.msra.mxu0 %v2241
    %2452 = vmatpush.bf16.msra.mxu0 %v2239
    %2453 = vmatpush.bf16.msra.mxu0 %v2237
    %2454 = vmatpush.bf16.msra.mxu0 %v2235
    %2455 = vmatpush.bf16.msra.mxu0 %v2233
    %2456 = vmatpush.bf16.msra.mxu0 %v2231
    %2457 = vmatpush.bf16.msra.mxu0 %v2229
    %2458 = vmatpush.bf16.msra.mxu0 %v2227
    %2459 = vmatmul.bf16.gmra.mxu0 %v1895
    %v2460 = vpop.f32.mrf.mxu0
    %v2461 = vadd.f32 %v1983, %v2460
    %v2462 = vpop.f32.mrf.mxu0
    %2463 = vdwg.mxu0
    %2464 = vmatpush.bf16.msra.mxu0 %v2257
    %2465 = vmatpush.bf16.msra.mxu0 %v2255
    %2466 = vmatpush.bf16.msra.mxu0 %v2253
    %2467 = vmatpush.bf16.msra.mxu0 %v2251
    %2468 = vmatpush.bf16.msra.mxu0 %v2249
    %2469 = vmatpush.bf16.msra.mxu0 %v2247
    %2470 = vmatpush.bf16.msra.mxu0 %v2245
    %2471 = vmatpush.bf16.msra.mxu0 %v2243
    %2472 = vmatmul.bf16.gmra.mxu0 %v1896
    %v2473 = vpop.f32.mrf.mxu0
    %v2474 = vadd.f32 %v2461, %v2473
    %v2475 = vpop.f32.mrf.mxu0
    %2476 = vdwg.mxu0
    %2477 = vmatpush.bf16.msra.mxu0 %v2273
    %2478 = vmatpush.bf16.msra.mxu0 %v2271
    %2479 = vmatpush.bf16.msra.mxu0 %v2269
    %2480 = vmatpush.bf16.msra.mxu0 %v2267
    %2481 = vmatpush.bf16.msra.mxu0 %v2265
    %2482 = vmatpush.bf16.msra.mxu0 %v2263
    %2483 = vmatpush.bf16.msra.mxu0 %v2261
    %2484 = vmatpush.bf16.msra.mxu0 %v2259
    %2485 = vmatmul.bf16.gmra.mxu0 %v1897
    %v2486 = vpop.f32.mrf.mxu0
    %v2487 = vadd.f32 %v2474, %v2486
    %v2488 = vpop.f32.mrf.mxu0
    %2489 = vdwg.mxu0
    %2490 = vmatpush.bf16.msra.mxu0 %v2289
    %2491 = vmatpush.bf16.msra.mxu0 %v2287
    %2492 = vmatpush.bf16.msra.mxu0 %v2285
    %2493 = vmatpush.bf16.msra.mxu0 %v2283
    %2494 = vmatpush.bf16.msra.mxu0 %v2281
    %2495 = vmatpush.bf16.msra.mxu0 %v2279
    %2496 = vmatpush.bf16.msra.mxu0 %v2277
    %2497 = vmatpush.bf16.msra.mxu0 %v2275
    %2498 = vmatmul.bf16.gmra.mxu0 %v1898
    %v2499 = vpop.f32.mrf.mxu0
    %v2500 = vadd.f32 %v2487, %v2499
    %v2501 = vpop.f32.mrf.mxu0
    %2502 = vdwg.mxu0
    %2503 = vmatpush.bf16.msra.mxu0 %v2305
    %2504 = vmatpush.bf16.msra.mxu0 %v2303
    %2505 = vmatpush.bf16.msra.mxu0 %v2301
    %2506 = vmatpush.bf16.msra.mxu0 %v2299
    %2507 = vmatpush.bf16.msra.mxu0 %v2297
    %2508 = vmatpush.bf16.msra.mxu0 %v2295
    %2509 = vmatpush.bf16.msra.mxu0 %v2293
    %2510 = vmatpush.bf16.msra.mxu0 %v2291
    %2511 = vmatmul.bf16.gmra.mxu0 %v1899
    %v2512 = vpop.f32.mrf.mxu0
    %v2513 = vadd.f32 %v2500, %v2512
    %v2514 = vpop.f32.mrf.mxu0
    %2515 = vdwg.mxu0
    %v2516 = vmul.f32 %v2448, 0.5
    %v2517 = vmul.f32 %v2513, 0.5
    %v2518 = vtanh.pop %v2516
    %v2519 = vtanh.pop %v2517
    %v2520 = vmul.f32 %v2518, 0.5
    %v2521 = vmul.f32 %v2519, 0.5
    %v2522 = vadd.f32 %v2520, 0.5
    %v2523 = vadd.f32 %v2521, 0.5
    %2524 = vst [vmem:[%s13] sm:$0xff] %v2522
    %2525 = vst [vmem:[%s13 + $0x8] sm:$0xff] %v2523
    // Predicated region
    $region98: #{autoencoder_forward.1} parent=1 // pred_check
      _
    $region99: #{autoencoder_forward.1} parent=1 // pred_check_branch
      %2527 = sbr.rel (0) target = $region101
    $region100: #{autoencoder_forward.1} parent=1 // pred_region
      _
    $region101: #{autoencoder_forward.1} parent=1 // pred_fallthru
      _
    // Predicated region
    $region102: #{autoencoder_forward.1} parent=1 // pred_check
      _
    $region103: #{autoencoder_forward.1} parent=1 // pred_check_branch
      %2529 = sbr.rel (0) target = $region105
    $region104: #{autoencoder_forward.1} parent=1 // pred_region
      _
    $region105: #{autoencoder_forward.1} parent=1 // pred_fallthru
      _
    %2530 = vsyncpa [#allocation3], 1
    %2531 = vsyncpa [#allocation5], 1
    %2532 = vsyncpa [#allocation8], 1
    %2533 = vsyncpa [#allocation11], 1
    %2534 = vsyncpa [#allocation14], 1
    %2535 = vsyncpa [#allocation17], 1

</llo_original>
